<compile_context>
chip_gen: v5e
topology: v5e:2x2
jax: 0.10.0
libtpu: 0.0.40
codegen_flags: <defaults>
</compile_context>

<pallas_src>
import functools
import math

import jax
import jax.numpy as jnp
from jax import lax
from jax.experimental import pallas as pl
from jax.experimental.pallas import tpu as pltpu

EMB_SIZE = 300
LN_EPS = 1e-6
MASK_FILL = -10000000.0


def _bytes(shape, dtype):
    return math.prod(shape) * jnp.dtype(dtype).itemsize


def _mha_kernel(n_head, key_dim, value_dim, bt, lq, lk, emb_pad, emb_true, emit_attn,
                q_ref, k_ref, v_ref, bias_ref,
                wq_ref, wk_ref, wv_ref, wfc_ref, gamma_ref, beta_ref,
                *rest):
    if emit_attn:
        out_ref, attn_ref, fc_scr = rest
    else:
        out_ref, fc_scr = rest
        attn_ref = None

    f32 = jnp.float32
    bf16 = jnp.bfloat16
    hdk = n_head * key_dim
    hdv = n_head * value_dim

    # ---- Input projections on the flattened (Bt*L, Epad) slab: big-M MXU ----
    xq = q_ref[...].reshape(bt * lq, emb_pad)            # f32; also the residual
    xk = k_ref[...].reshape(bt * lk, emb_pad)            # bf16 (shipped bf16)
    xv = v_ref[...].reshape(bt * lk, emb_pad)            # bf16

    # bf16 MXU operands, f32 accumulation. 1/sqrt(key_dim) already folded into wq.
    qp = jnp.dot(xq.astype(bf16), wq_ref[...],
                 preferred_element_type=f32).reshape(bt, lq, hdk)
    kp = jnp.dot(xk, wk_ref[...],
                 preferred_element_type=f32).reshape(bt, lk, hdk)
    vp = jnp.dot(xv, wv_ref[...],
                 preferred_element_type=f32).reshape(bt, lk, hdv)

    bias = bias_ref[...].astype(f32)                     # (Bt, Lq, Lk) additive mask

    # Score / softmax / context path, batched over the Bt sequences; only the
    # (small) head loop is statically unrolled.
    for h in range(n_head):
        hk = slice(h * key_dim, (h + 1) * key_dim)
        hv = slice(h * value_dim, (h + 1) * value_dim)
        qh = qp[:, :, hk].astype(bf16)                   # (Bt, Lq, Dk)
        kh = kp[:, :, hk].astype(bf16)                   # (Bt, Lk, Dk)
        vh = vp[:, :, hv].astype(bf16)                   # (Bt, Lk, Dv)

        # scores = (q W_q / sqrt(dk)) @ (k W_k)^T + additive mask bias
        s = jnp.einsum('bqd,bkd->bqk', qh, kh,
                       preferred_element_type=f32) + bias            # (Bt, Lq, Lk)
        s = s - jnp.max(s, axis=-1, keepdims=True)
        e = jnp.exp(s)
        p = e * pl.reciprocal(jnp.sum(e, axis=-1, keepdims=True), approx=True)
        p16 = p.astype(bf16)
        if emit_attn:
            attn_ref[:, h, :, :] = p16                   # bf16 attention probs out

        ctx = jnp.einsum('bqk,bkd->bqd', p16, vh,
                         preferred_element_type=f32)                 # (Bt, Lq, Dv)
        fc_scr[:, :, hv] = ctx.astype(bf16)              # head-major columns, VMEM

    # ---- One fc matmul over the full H*Dv contraction + single residual add ----
    fc_in = fc_scr[...].reshape(bt * lq, hdv)            # bf16 (Bt*Lq, H*Dv)
    o = jnp.dot(fc_in, wfc_ref[...], preferred_element_type=f32) + xq

    # LayerNorm over the true (unpadded) embedding dim. Padded columns of o are
    # exactly zero (zero-padded residual + zero-padded wfc columns), so sums
    # over the padded width equal sums over the true width.
    inv_e = 1.0 / float(emb_true)
    mean = jnp.sum(o, axis=-1, keepdims=True) * inv_e
    msq = jnp.sum(o * o, axis=-1, keepdims=True) * inv_e
    var = msq - mean * mean
    o = (o - mean) * lax.rsqrt(var + LN_EPS)
    o = o * gamma_ref[...] + beta_ref[...]               # padded gamma/beta are 0
    out_ref[...] = o.reshape(bt, lq, emb_pad).astype(out_ref.dtype)


def multi_head_attention(q, k, v, attn_mask, params, *, n_head, key_dim, value_dim,
                         block_b=None, return_attn=True):
    B, Lq, E = q.shape
    Lk = k.shape[1]
    assert v.shape[1] == Lk, "key/value sequence lengths must match"
    wq, wk, wv, wfc, gamma, beta = params

    # ---- Lane-dense padding of the embedding dim: 300 -> 384 (3 x 128) ----
    Epad = ((E + 127) // 128) * 128
    pad_e = Epad - E

    q_p = jnp.pad(q, ((0, 0), (0, 0), (0, pad_e))).astype(jnp.float32)
    k_p = jnp.pad(k, ((0, 0), (0, 0), (0, pad_e))).astype(jnp.bfloat16)   # MXU-only
    v_p = jnp.pad(v, ((0, 0), (0, 0), (0, pad_e))).astype(jnp.bfloat16)   # MXU-only

    # Fold softmax temperature into the query projection; bf16 MXU weights;
    # zero-pad the embedding axis so padded features contribute nothing.
    wq_p = jnp.pad(wq / (key_dim ** 0.5), ((0, pad_e), (0, 0))).astype(jnp.bfloat16)
    wk_p = jnp.pad(wk, ((0, pad_e), (0, 0))).astype(jnp.bfloat16)
    wv_p = jnp.pad(wv, ((0, pad_e), (0, 0))).astype(jnp.bfloat16)
    wfc_p = jnp.pad(wfc, ((0, 0), (0, pad_e))).astype(jnp.bfloat16)
    gamma_p = jnp.pad(gamma, (0, pad_e)).reshape(1, Epad).astype(jnp.float32)
    beta_p = jnp.pad(beta, (0, pad_e)).reshape(1, Epad).astype(jnp.float32)

    # Additive attention bias: 0 where kept, MASK_FILL where masked (bf16 halves
    # the mask DMA; in-kernel it is a single add).
    bias = ((1.0 - attn_mask) * MASK_FILL).astype(jnp.bfloat16)

    if block_b is None:
        # Aim for ~256 projection rows (Bt*Lq) per grid step — half-fills a
        # v6e/v7x 256x256 MXU pass (v5e's 128x128 MXU saturates earlier) — but
        # keep at least 2 grid steps when B >= 2 so ("parallel",) can shard the
        # batch axis across v7x's two TensorCores.
        block_b = max(1, min(B, 256 // max(1, Lq)))
        if B >= 2:
            block_b = min(block_b, max(1, B // 2))
        while B % block_b:
            block_b -= 1
    Bt = block_b
    assert B % Bt == 0

    hd_k = n_head * key_dim
    hd_v = n_head * value_dim
    kernel = functools.partial(_mha_kernel, n_head, key_dim, value_dim,
                               Bt, Lq, Lk, Epad, E, return_attn)

    in_specs = [
        pl.BlockSpec((Bt, Lq, Epad), lambda i: (i, 0, 0)),
        pl.BlockSpec((Bt, Lk, Epad), lambda i: (i, 0, 0)),
        pl.BlockSpec((Bt, Lk, Epad), lambda i: (i, 0, 0)),
        pl.BlockSpec((Bt, Lq, Lk), lambda i: (i, 0, 0)),
        # Constant weight blocks (same tile every grid step).
        pl.BlockSpec((Epad, hd_k), lambda i: (0, 0)),
        pl.BlockSpec((Epad, hd_k), lambda i: (0, 0)),
        pl.BlockSpec((Epad, hd_v), lambda i: (0, 0)),
        pl.BlockSpec((hd_v, Epad), lambda i: (0, 0)),
        pl.BlockSpec((1, Epad), lambda i: (0, 0)),
        pl.BlockSpec((1, Epad), lambda i: (0, 0)),
    ]
    if return_attn:
        out_shape = (
            jax.ShapeDtypeStruct((B, Lq, Epad), jnp.float32),
            jax.ShapeDtypeStruct((B, n_head, Lq, Lk), jnp.bfloat16),
        )
        out_specs = [
            pl.BlockSpec((Bt, Lq, Epad), lambda i: (i, 0, 0)),
            pl.BlockSpec((Bt, n_head, Lq, Lk), lambda i: (i, 0, 0, 0)),
        ]
    else:
        out_shape = jax.ShapeDtypeStruct((B, Lq, Epad), jnp.float32)
        out_specs = pl.BlockSpec((Bt, Lq, Epad), lambda i: (i, 0, 0))

    # ---- VMEM budget computed from the actual tile sizes (not hard-coded) ----
    in_tile_bytes = (
        _bytes((Bt, Lq, Epad), jnp.float32)
        + 2 * _bytes((Bt, Lk, Epad), jnp.bfloat16)
        + _bytes((Bt, Lq, Lk), jnp.bfloat16)
        + 2 * _bytes((Epad, hd_k), jnp.bfloat16)
        + _bytes((Epad, hd_v), jnp.bfloat16)
        + _bytes((hd_v, Epad), jnp.bfloat16)
        + 2 * _bytes((1, Epad), jnp.float32))
    out_tile_bytes = _bytes((Bt, Lq, Epad), jnp.float32)
    if return_attn:
        out_tile_bytes += _bytes((Bt, n_head, Lq, Lk), jnp.bfloat16)
    scratch_bytes = _bytes((Bt, Lq, hd_v), jnp.bfloat16)
    # f32 in-kernel temporaries: projections, one live (Bt,Lq,Lk) score tile
    # (plus exp/prob copies), and the (Bt*Lq, Epad) pre-LayerNorm activation.
    temp_bytes = 4 * (Bt * Lq * (hd_k + Epad) + Bt * Lk * (hd_k + hd_v)
                      + 4 * Bt * Lq * Lk)
    vmem_limit = 2 * (in_tile_bytes + out_tile_bytes) + scratch_bytes + temp_bytes
    # 2x safety margin, floor for tiny shapes, ceiling below 128 MiB physical.
    # TODO(synk): cap at pltpu.get_tpu_info().vmem_capacity_bytes for v7x (64 MiB).
    vmem_limit = int(min(max(2 * vmem_limit, 16 * 1024 * 1024), 96 * 1024 * 1024))

    grid_spec = pltpu.PrefetchScalarGridSpec(
        num_scalar_prefetch=0,
        grid=(B // Bt,),
        in_specs=in_specs,
        out_specs=out_specs,
        scratch_shapes=[pltpu.VMEM((Bt, Lq, hd_v), jnp.bfloat16)],
    )
    result = pl.pallas_call(
        kernel,
        out_shape=out_shape,
        grid_spec=grid_spec,
        compiler_params=pltpu.CompilerParams(
            # Batch blocks are fully independent -> shard across TensorCores.
            dimension_semantics=("parallel",),
            vmem_limit_bytes=vmem_limit,
        ),
    )(q_p, k_p, v_p, bias, wq_p, wk_p, wv_p, wfc_p, gamma_p, beta_p)

    if return_attn:
        out_p, attn = result
        return out_p[..., :E], attn
    return result[..., :E]


def reference(q, k, v, mask, params, *, n_head, key_dim, value_dim):
    """Pure-JAX f32 replica of the PyTorch forward (eval mode)."""
    wq, wk, wv, wfc, gamma, beta = params
    B, Lq, _ = q.shape
    Lk = k.shape[1]
    qp = (q @ wq).reshape(B, Lq, n_head, key_dim).transpose(0, 2, 1, 3)
    kp = (k @ wk).reshape(B, Lk, n_head, key_dim).transpose(0, 2, 1, 3)
    vp = (v @ wv).reshape(B, Lk, n_head, value_dim).transpose(0, 2, 1, 3)
    s = jnp.einsum('bhqd,bhkd->bhqk', qp / (key_dim ** 0.5), kp)
    s = jnp.where(mask[:, None] == 0, MASK_FILL, s)
    a = jax.nn.softmax(s, axis=-1)
    ctx = jnp.einsum('bhqk,bhkd->bhqd', a, vp)
    ctx = ctx.transpose(0, 2, 1, 3).reshape(B, Lq, n_head * value_dim)
    o = ctx @ wfc + q
    mean = o.mean(-1, keepdims=True)
    var = ((o - mean) ** 2).mean(-1, keepdims=True)
    o = (o - mean) / jnp.sqrt(var + LN_EPS) * gamma + beta
    return o, a


if __name__ == "__main__":
    B, L = 2, 8
    n_head, key_dim, value_dim = 2, 16, 16

    key = jax.random.PRNGKey(0)
    k_q, k_k, k_v, k_m, k_wq, k_wk, k_wv, k_fc = jax.random.split(key, 8)

    q = jax.random.normal(k_q, (B, L, EMB_SIZE), dtype=jnp.float32)
    k = jax.random.normal(k_k, (B, L, EMB_SIZE), dtype=jnp.float32)
    v = jax.random.normal(k_v, (B, L, EMB_SIZE), dtype=jnp.float32)
    # Random keep/mask pattern; force the diagonal on so no row is fully masked
    # (a fully-masked row is degenerate in the reference too).
    attn_mask = jnp.maximum(
        jax.random.bernoulli(k_m, 0.8, (B, L, L)).astype(jnp.float32),
        jnp.eye(L, dtype=jnp.float32)[None])

    # Deterministic synthetic parameters (shapes from the module __init__).
    wq = 0.05 * jax.random.normal(k_wq, (EMB_SIZE, n_head * key_dim), dtype=jnp.float32)
    wk = 0.05 * jax.random.normal(k_wk, (EMB_SIZE, n_head * key_dim), dtype=jnp.float32)
    wv = 0.05 * jax.random.normal(k_wv, (EMB_SIZE, n_head * value_dim), dtype=jnp.float32)
    wfc = 0.05 * jax.random.normal(k_fc, (n_head * value_dim, EMB_SIZE), dtype=jnp.float32)
    gamma = jnp.ones((EMB_SIZE,), dtype=jnp.float32)   # LayerNorm default weight
    beta = jnp.zeros((EMB_SIZE,), dtype=jnp.float32)   # LayerNorm default bias
    params = (wq, wk, wv, wfc, gamma, beta)

    out, attn = multi_head_attention(q, k, v, attn_mask, params,
                                     n_head=n_head, key_dim=key_dim,
                                     value_dim=value_dim, return_attn=True)
    out = jax.block_until_ready(out)
    attn = jax.block_until_ready(attn)

    # Variant that drops the attention-probability output entirely (largest
    # HBM write + largest double-buffered VMEM tile at production lengths).
    out_only = jax.block_until_ready(
        multi_head_attention(q, k, v, attn_mask, params,
                             n_head=n_head, key_dim=key_dim,
                             value_dim=value_dim, return_attn=False))

    out_ref, attn_ref = reference(q, k, v, attn_mask, params,
                                  n_head=n_head, key_dim=key_dim,
                                  value_dim=value_dim)
    assert out.shape == (B, L, EMB_SIZE)
    assert out_only.shape == (B, L, EMB_SIZE)
    assert attn.shape == (B, n_head, L, L)
    assert attn.dtype == jnp.bfloat16
    # Tolerances account for bf16 MXU operands / bf16 k,v inputs, bf16
    # attention-probability output and the approx reciprocal.
    assert jnp.allclose(out, out_ref, rtol=1e-2, atol=1e-2)
    assert jnp.allclose(out_only, out_ref, rtol=1e-2, atol=1e-2)
    assert jnp.allclose(attn.astype(jnp.float32), attn_ref, rtol=2e-2, atol=1e-2)

    print("KERNEL_OK")
</pallas_src>

<mosaic_0001>
module attributes {stable_mosaic.version = 11 : i64} {
  func.func @_mha_kernel(%arg0: i32, %arg1: memref<1x8x384xf32, #tpu.memory_space<vmem>>, %arg2: memref<1x8x384xbf16, #tpu.memory_space<vmem>>, %arg3: memref<1x8x384xbf16, #tpu.memory_space<vmem>>, %arg4: memref<1x8x8xbf16, #tpu.memory_space<vmem>>, %arg5: memref<384x32xbf16, #tpu.memory_space<vmem>>, %arg6: memref<384x32xbf16, #tpu.memory_space<vmem>>, %arg7: memref<384x32xbf16, #tpu.memory_space<vmem>>, %arg8: memref<32x384xbf16, #tpu.memory_space<vmem>>, %arg9: memref<1x384xf32, #tpu.memory_space<vmem>>, %arg10: memref<1x384xf32, #tpu.memory_space<vmem>>, %arg11: memref<1x8x384xf32, #tpu.memory_space<vmem>>, %arg12: memref<1x2x8x8xbf16, #tpu.memory_space<vmem>>, %arg13: memref<1x8x32xbf16, #tpu.memory_space<vmem>>) attributes {dimension_semantics = [#tpu.dimension_semantics<parallel>], iteration_bounds = array<i64: 2>, scalar_prefetch = 0 : i64, scratch_operands = 1 : i64, tpu.core_type = #tpu.core_type<tc>, window_params = [{transform_indices = @transform_0, window_bounds = array<i64: 1, 8, 384>}, {transform_indices = @transform_1, window_bounds = array<i64: 1, 8, 384>}, {transform_indices = @transform_2, window_bounds = array<i64: 1, 8, 384>}, {transform_indices = @transform_3, window_bounds = array<i64: 1, 8, 8>}, {pipeline_mode = #tpu.pipeline_mode<synchronous>, transform_indices = @transform_4, window_bounds = array<i64: 384, 32>}, {pipeline_mode = #tpu.pipeline_mode<synchronous>, transform_indices = @transform_5, window_bounds = array<i64: 384, 32>}, {pipeline_mode = #tpu.pipeline_mode<synchronous>, transform_indices = @transform_6, window_bounds = array<i64: 384, 32>}, {pipeline_mode = #tpu.pipeline_mode<synchronous>, transform_indices = @transform_7, window_bounds = array<i64: 32, 384>}, {pipeline_mode = #tpu.pipeline_mode<synchronous>, transform_indices = @transform_8, window_bounds = array<i64: 1, 384>}, {pipeline_mode = #tpu.pipeline_mode<synchronous>, transform_indices = @transform_9, window_bounds = array<i64: 1, 384>}, {transform_indices = @transform_10, window_bounds = array<i64: 1, 8, 384>}, {transform_indices = @transform_11, window_bounds = array<i64: 1, 2, 8, 8>}]} {
    %c0 = arith.constant 0 : index
    %c0_0 = arith.constant 0 : index
    %c0_1 = arith.constant 0 : index
    %0 = vector.load %arg1[%c0, %c0_0, %c0_1] : memref<1x8x384xf32, #tpu.memory_space<vmem>>, vector<1x8x384xf32>
    %1 = vector.shape_cast %0 : vector<1x8x384xf32> to vector<8x384xf32>
    %c0_2 = arith.constant 0 : index
    %c0_3 = arith.constant 0 : index
    %c0_4 = arith.constant 0 : index
    %2 = vector.load %arg2[%c0_2, %c0_3, %c0_4] : memref<1x8x384xbf16, #tpu.memory_space<vmem>>, vector<1x8x384xbf16>
    %3 = vector.shape_cast %2 : vector<1x8x384xbf16> to vector<8x384xbf16>
    %c0_5 = arith.constant 0 : index
    %c0_6 = arith.constant 0 : index
    %c0_7 = arith.constant 0 : index
    %4 = vector.load %arg3[%c0_5, %c0_6, %c0_7] : memref<1x8x384xbf16, #tpu.memory_space<vmem>>, vector<1x8x384xbf16>
    %5 = vector.shape_cast %4 : vector<1x8x384xbf16> to vector<8x384xbf16>
    %6 = arith.truncf %1 : vector<8x384xf32> to vector<8x384xbf16>
    %c0_8 = arith.constant 0 : index
    %c0_9 = arith.constant 0 : index
    %7 = vector.load %arg5[%c0_8, %c0_9] : memref<384x32xbf16, #tpu.memory_space<vmem>>, vector<384x32xbf16>
    %cst = arith.constant dense<0.000000e+00> : vector<8x32xf32>
    %8 = tpu.matmul %6, %7, %cst {dimension_numbers = #tpu.dot_dimension_numbers<[1], [0], [0], [1], [0, 0, 1, 1], [], []>} : vector<8x384xbf16>, vector<384x32xbf16>, vector<8x32xf32> -> vector<8x32xf32>
    %9 = vector.shape_cast %8 : vector<8x32xf32> to vector<1x8x32xf32>
    %c0_10 = arith.constant 0 : index
    %c0_11 = arith.constant 0 : index
    %10 = vector.load %arg6[%c0_10, %c0_11] : memref<384x32xbf16, #tpu.memory_space<vmem>>, vector<384x32xbf16>
    %cst_12 = arith.constant dense<0.000000e+00> : vector<8x32xf32>
    %11 = tpu.matmul %3, %10, %cst_12 {dimension_numbers = #tpu.dot_dimension_numbers<[1], [0], [0], [1], [0, 0, 1, 1], [], []>} : vector<8x384xbf16>, vector<384x32xbf16>, vector<8x32xf32> -> vector<8x32xf32>
    %12 = vector.shape_cast %11 : vector<8x32xf32> to vector<1x8x32xf32>
    %c0_13 = arith.constant 0 : index
    %c0_14 = arith.constant 0 : index
    %13 = vector.load %arg7[%c0_13, %c0_14] : memref<384x32xbf16, #tpu.memory_space<vmem>>, vector<384x32xbf16>
    %cst_15 = arith.constant dense<0.000000e+00> : vector<8x32xf32>
    %14 = tpu.matmul %5, %13, %cst_15 {dimension_numbers = #tpu.dot_dimension_numbers<[1], [0], [0], [1], [0, 0, 1, 1], [], []>} : vector<8x384xbf16>, vector<384x32xbf16>, vector<8x32xf32> -> vector<8x32xf32>
    %15 = vector.shape_cast %14 : vector<8x32xf32> to vector<1x8x32xf32>
    %c0_16 = arith.constant 0 : index
    %c0_17 = arith.constant 0 : index
    %c0_18 = arith.constant 0 : index
    %16 = vector.load %arg4[%c0_16, %c0_17, %c0_18] : memref<1x8x8xbf16, #tpu.memory_space<vmem>>, vector<1x8x8xbf16>
    %17 = arith.extf %16 : vector<1x8x8xbf16> to vector<1x8x8xf32>
    %18 = vector.extract_strided_slice %9 {offsets = [0, 0, 0], sizes = [1, 8, 16], strides = [1, 1, 1]} : vector<1x8x32xf32> to vector<1x8x16xf32>
    %19 = arith.truncf %18 : vector<1x8x16xf32> to vector<1x8x16xbf16>
    %20 = vector.extract_strided_slice %12 {offsets = [0, 0, 0], sizes = [1, 8, 16], strides = [1, 1, 1]} : vector<1x8x32xf32> to vector<1x8x16xf32>
    %21 = arith.truncf %20 : vector<1x8x16xf32> to vector<1x8x16xbf16>
    %22 = vector.extract_strided_slice %15 {offsets = [0, 0, 0], sizes = [1, 8, 16], strides = [1, 1, 1]} : vector<1x8x32xf32> to vector<1x8x16xf32>
    %23 = arith.truncf %22 : vector<1x8x16xf32> to vector<1x8x16xbf16>
    "tpu.trace_start"() <{level = 10 : i32, message = "bqd,bkd->bqk"}> : () -> ()
    %cst_19 = arith.constant dense<0.000000e+00> : vector<1x8x8xf32>
    %24 = tpu.matmul %19, %21, %cst_19 {dimension_numbers = #tpu.dot_dimension_numbers<[2], [2], [1], [1], [0, 0, 0, 1, 1, 1], [0], [0]>} : vector<1x8x16xbf16>, vector<1x8x16xbf16>, vector<1x8x8xf32> -> vector<1x8x8xf32>
    "tpu.trace_stop"() : () -> ()
    %25 = arith.addf %24, %17 : vector<1x8x8xf32>
    %cst_20 = arith.constant dense<0xFF800000> : vector<1x8xf32>
    %26 = vector.multi_reduction <maximumf>, %25, %cst_20 [2] : vector<1x8x8xf32> to vector<1x8xf32>
    %27 = vector.shape_cast %26 : vector<1x8xf32> to vector<1x8x1xf32>
    %28 = vector.broadcast %27 : vector<1x8x1xf32> to vector<1x8x8xf32>
    %29 = arith.subf %25, %28 : vector<1x8x8xf32>
    %30 = math.exp %29 : vector<1x8x8xf32>
    %cst_21 = arith.constant dense<0.000000e+00> : vector<1x8xf32>
    %31 = vector.multi_reduction <add>, %30, %cst_21 [2] : vector<1x8x8xf32> to vector<1x8xf32>
    %32 = vector.shape_cast %31 : vector<1x8xf32> to vector<1x8x1xf32>
    %33 = tpu.reciprocal %32 {approx = true} : vector<1x8x1xf32> -> vector<1x8x1xf32>
    %34 = vector.broadcast %33 : vector<1x8x1xf32> to vector<1x8x8xf32>
    %35 = arith.mulf %30, %34 : vector<1x8x8xf32>
    %36 = arith.truncf %35 : vector<1x8x8xf32> to vector<1x8x8xbf16>
    %c0_22 = arith.constant 0 : index
    %c0_23 = arith.constant 0 : index
    %c0_24 = arith.constant 0 : index
    %c0_25 = arith.constant 0 : index
    %37 = vector.load %arg12[%c0_22, %c0_23, %c0_24, %c0_25] : memref<1x2x8x8xbf16, #tpu.memory_space<vmem>>, vector<1x1x8x8xbf16>
    %38 = vector.shape_cast %37 : vector<1x1x8x8xbf16> to vector<1x8x8xbf16>
    %39 = vector.shape_cast %36 : vector<1x8x8xbf16> to vector<1x1x8x8xbf16>
    tpu.vector_store %arg12[%c0_22, %c0_23, %c0_24, %c0_25], %39 {strides = array<i32>} : memref<1x2x8x8xbf16, #tpu.memory_space<vmem>>, vector<1x1x8x8xbf16>,
    "tpu.trace_start"() <{level = 10 : i32, message = "bqk,bkd->bqd"}> : () -> ()
    %cst_26 = arith.constant dense<0.000000e+00> : vector<1x8x16xf32>
    %40 = tpu.matmul %36, %23, %cst_26 {dimension_numbers = #tpu.dot_dimension_numbers<[2], [1], [1], [2], [0, 0, 0, 1, 1, 2], [0], [0]>} : vector<1x8x8xbf16>, vector<1x8x16xbf16>, vector<1x8x16xf32> -> vector<1x8x16xf32>
    "tpu.trace_stop"() : () -> ()
    %41 = arith.truncf %40 : vector<1x8x16xf32> to vector<1x8x16xbf16>
    %c0_27 = arith.constant 0 : index
    %c0_28 = arith.constant 0 : index
    %c0_29 = arith.constant 0 : index
    %42 = vector.load %arg13[%c0_27, %c0_28, %c0_29] : memref<1x8x32xbf16, #tpu.memory_space<vmem>>, vector<1x8x16xbf16>
    tpu.vector_store %arg13[%c0_27, %c0_28, %c0_29], %41 {strides = array<i32>} : memref<1x8x32xbf16, #tpu.memory_space<vmem>>, vector<1x8x16xbf16>,
    %43 = vector.extract_strided_slice %9 {offsets = [0, 0, 16], sizes = [1, 8, 16], strides = [1, 1, 1]} : vector<1x8x32xf32> to vector<1x8x16xf32>
    %44 = arith.truncf %43 : vector<1x8x16xf32> to vector<1x8x16xbf16>
    %45 = vector.extract_strided_slice %12 {offsets = [0, 0, 16], sizes = [1, 8, 16], strides = [1, 1, 1]} : vector<1x8x32xf32> to vector<1x8x16xf32>
    %46 = arith.truncf %45 : vector<1x8x16xf32> to vector<1x8x16xbf16>
    %47 = vector.extract_strided_slice %15 {offsets = [0, 0, 16], sizes = [1, 8, 16], strides = [1, 1, 1]} : vector<1x8x32xf32> to vector<1x8x16xf32>
    %48 = arith.truncf %47 : vector<1x8x16xf32> to vector<1x8x16xbf16>
    "tpu.trace_start"() <{level = 10 : i32, message = "bqd,bkd->bqk"}> : () -> ()
    %cst_30 = arith.constant dense<0.000000e+00> : vector<1x8x8xf32>
    %49 = tpu.matmul %44, %46, %cst_30 {dimension_numbers = #tpu.dot_dimension_numbers<[2], [2], [1], [1], [0, 0, 0, 1, 1, 1], [0], [0]>} : vector<1x8x16xbf16>, vector<1x8x16xbf16>, vector<1x8x8xf32> -> vector<1x8x8xf32>
    "tpu.trace_stop"() : () -> ()
    %50 = arith.addf %49, %17 : vector<1x8x8xf32>
    %cst_31 = arith.constant dense<0xFF800000> : vector<1x8xf32>
    %51 = vector.multi_reduction <maximumf>, %50, %cst_31 [2] : vector<1x8x8xf32> to vector<1x8xf32>
    %52 = vector.shape_cast %51 : vector<1x8xf32> to vector<1x8x1xf32>
    %53 = vector.broadcast %52 : vector<1x8x1xf32> to vector<1x8x8xf32>
    %54 = arith.subf %50, %53 : vector<1x8x8xf32>
    %55 = math.exp %54 : vector<1x8x8xf32>
    %cst_32 = arith.constant dense<0.000000e+00> : vector<1x8xf32>
    %56 = vector.multi_reduction <add>, %55, %cst_32 [2] : vector<1x8x8xf32> to vector<1x8xf32>
    %57 = vector.shape_cast %56 : vector<1x8xf32> to vector<1x8x1xf32>
    %58 = tpu.reciprocal %57 {approx = true} : vector<1x8x1xf32> -> vector<1x8x1xf32>
    %59 = vector.broadcast %58 : vector<1x8x1xf32> to vector<1x8x8xf32>
    %60 = arith.mulf %55, %59 : vector<1x8x8xf32>
    %61 = arith.truncf %60 : vector<1x8x8xf32> to vector<1x8x8xbf16>
    %c0_33 = arith.constant 0 : index
    %c1 = arith.constant 1 : index
    %c0_34 = arith.constant 0 : index
    %c0_35 = arith.constant 0 : index
    %62 = vector.load %arg12[%c0_33, %c1, %c0_34, %c0_35] : memref<1x2x8x8xbf16, #tpu.memory_space<vmem>>, vector<1x1x8x8xbf16>
    %63 = vector.shape_cast %62 : vector<1x1x8x8xbf16> to vector<1x8x8xbf16>
    %64 = vector.shape_cast %61 : vector<1x8x8xbf16> to vector<1x1x8x8xbf16>
    tpu.vector_store %arg12[%c0_33, %c1, %c0_34, %c0_35], %64 {strides = array<i32>} : memref<1x2x8x8xbf16, #tpu.memory_space<vmem>>, vector<1x1x8x8xbf16>,
    "tpu.trace_start"() <{level = 10 : i32, message = "bqk,bkd->bqd"}> : () -> ()
    %cst_36 = arith.constant dense<0.000000e+00> : vector<1x8x16xf32>
    %65 = tpu.matmul %61, %48, %cst_36 {dimension_numbers = #tpu.dot_dimension_numbers<[2], [1], [1], [2], [0, 0, 0, 1, 1, 2], [0], [0]>} : vector<1x8x8xbf16>, vector<1x8x16xbf16>, vector<1x8x16xf32> -> vector<1x8x16xf32>
    "tpu.trace_stop"() : () -> ()
    %66 = arith.truncf %65 : vector<1x8x16xf32> to vector<1x8x16xbf16>
    %c0_37 = arith.constant 0 : index
    %c0_38 = arith.constant 0 : index
    %c16 = arith.constant 16 : index
    %67 = vector.load %arg13[%c0_37, %c0_38, %c16] : memref<1x8x32xbf16, #tpu.memory_space<vmem>>, vector<1x8x16xbf16>
    tpu.vector_store %arg13[%c0_37, %c0_38, %c16], %66 {strides = array<i32>} : memref<1x8x32xbf16, #tpu.memory_space<vmem>>, vector<1x8x16xbf16>,
    %c0_39 = arith.constant 0 : index
    %c0_40 = arith.constant 0 : index
    %c0_41 = arith.constant 0 : index
    %68 = vector.load %arg13[%c0_39, %c0_40, %c0_41] : memref<1x8x32xbf16, #tpu.memory_space<vmem>>, vector<1x8x32xbf16>
    %69 = vector.shape_cast %68 : vector<1x8x32xbf16> to vector<8x32xbf16>
    %c0_42 = arith.constant 0 : index
    %c0_43 = arith.constant 0 : index
    %70 = vector.load %arg8[%c0_42, %c0_43] : memref<32x384xbf16, #tpu.memory_space<vmem>>, vector<32x384xbf16>
    %cst_44 = arith.constant dense<0.000000e+00> : vector<8x384xf32>
    %71 = tpu.matmul %69, %70, %cst_44 {dimension_numbers = #tpu.dot_dimension_numbers<[1], [0], [0], [1], [0, 0, 1, 1], [], []>} : vector<8x32xbf16>, vector<32x384xbf16>, vector<8x384xf32> -> vector<8x384xf32>
    %72 = arith.addf %71, %1 : vector<8x384xf32>
    %cst_45 = arith.constant dense<0.000000e+00> : vector<8xf32>
    %73 = vector.multi_reduction <add>, %72, %cst_45 [1] : vector<8x384xf32> to vector<8xf32>
    %74 = vector.shape_cast %73 : vector<8xf32> to vector<8x1xf32>
    %cst_46 = arith.constant 0.00333333341 : f32
    %75 = vector.broadcast %cst_46 : f32 to vector<8x1xf32>
    %76 = arith.mulf %74, %75 : vector<8x1xf32>
    %77 = arith.mulf %72, %72 : vector<8x384xf32>
    %cst_47 = arith.constant dense<0.000000e+00> : vector<8xf32>
    %78 = vector.multi_reduction <add>, %77, %cst_47 [1] : vector<8x384xf32> to vector<8xf32>
    %79 = vector.shape_cast %78 : vector<8xf32> to vector<8x1xf32>
    %cst_48 = arith.constant 0.00333333341 : f32
    %80 = vector.broadcast %cst_48 : f32 to vector<8x1xf32>
    %81 = arith.mulf %79, %80 : vector<8x1xf32>
    %82 = arith.mulf %76, %76 : vector<8x1xf32>
    %83 = arith.subf %81, %82 : vector<8x1xf32>
    %84 = vector.broadcast %76 : vector<8x1xf32> to vector<8x384xf32>
    %85 = arith.subf %72, %84 : vector<8x384xf32>
    %cst_49 = arith.constant 9.99999997E-7 : f32
    %86 = vector.broadcast %cst_49 : f32 to vector<8x1xf32>
    %87 = arith.addf %83, %86 : vector<8x1xf32>
    %88 = math.rsqrt %87 : vector<8x1xf32>
    %89 = vector.broadcast %88 : vector<8x1xf32> to vector<8x384xf32>
    %90 = arith.mulf %85, %89 : vector<8x384xf32>
    %c0_50 = arith.constant 0 : index
    %c0_51 = arith.constant 0 : index
    %91 = vector.load %arg9[%c0_50, %c0_51] : memref<1x384xf32, #tpu.memory_space<vmem>>, vector<1x384xf32>
    %92 = vector.broadcast %91 : vector<1x384xf32> to vector<8x384xf32>
    %93 = arith.mulf %90, %92 : vector<8x384xf32>
    %c0_52 = arith.constant 0 : index
    %c0_53 = arith.constant 0 : index
    %94 = vector.load %arg10[%c0_52, %c0_53] : memref<1x384xf32, #tpu.memory_space<vmem>>, vector<1x384xf32>
    %95 = vector.broadcast %94 : vector<1x384xf32> to vector<8x384xf32>
    %96 = arith.addf %93, %95 : vector<8x384xf32>
    %97 = vector.shape_cast %96 : vector<8x384xf32> to vector<1x8x384xf32>
    %c0_54 = arith.constant 0 : index
    %c0_55 = arith.constant 0 : index
    %c0_56 = arith.constant 0 : index
    %98 = vector.load %arg11[%c0_54, %c0_55, %c0_56] : memref<1x8x384xf32, #tpu.memory_space<vmem>>, vector<1x8x384xf32>
    tpu.vector_store %arg11[%c0_54, %c0_55, %c0_56], %97 {strides = array<i32>} : memref<1x8x384xf32, #tpu.memory_space<vmem>>, vector<1x8x384xf32>,
    return
  }
  func.func @transform_0(%arg0: i32) -> (i32, i32, i32) {
    %c0_i32 = arith.constant 0 : i32
    %c0_i32_0 = arith.constant 0 : i32
    %c0_i32_1 = arith.constant 0 : i32
    return %arg0, %c0_i32, %c0_i32_0 : i32, i32, i32
  }
  func.func @transform_1(%arg0: i32) -> (i32, i32, i32) {
    %c0_i32 = arith.constant 0 : i32
    %c0_i32_0 = arith.constant 0 : i32
    %c0_i32_1 = arith.constant 0 : i32
    return %arg0, %c0_i32, %c0_i32_0 : i32, i32, i32
  }
  func.func @transform_2(%arg0: i32) -> (i32, i32, i32) {
    %c0_i32 = arith.constant 0 : i32
    %c0_i32_0 = arith.constant 0 : i32
    %c0_i32_1 = arith.constant 0 : i32
    return %arg0, %c0_i32, %c0_i32_0 : i32, i32, i32
  }
  func.func @transform_3(%arg0: i32) -> (i32, i32, i32) {
    %c0_i32 = arith.constant 0 : i32
    %c0_i32_0 = arith.constant 0 : i32
    %c0_i32_1 = arith.constant 0 : i32
    return %arg0, %c0_i32, %c0_i32_0 : i32, i32, i32
  }
  func.func @transform_4(%arg0: i32) -> (i32, i32) {
    %c0_i32 = arith.constant 0 : i32
    %c0_i32_0 = arith.constant 0 : i32
    %c0_i32_1 = arith.constant 0 : i32
    return %c0_i32, %c0_i32_0 : i32, i32
  }
  func.func @transform_5(%arg0: i32) -> (i32, i32) {
    %c0_i32 = arith.constant 0 : i32
    %c0_i32_0 = arith.constant 0 : i32
    %c0_i32_1 = arith.constant 0 : i32
    return %c0_i32, %c0_i32_0 : i32, i32
  }
  func.func @transform_6(%arg0: i32) -> (i32, i32) {
    %c0_i32 = arith.constant 0 : i32
    %c0_i32_0 = arith.constant 0 : i32
    %c0_i32_1 = arith.constant 0 : i32
    return %c0_i32, %c0_i32_0 : i32, i32
  }
  func.func @transform_7(%arg0: i32) -> (i32, i32) {
    %c0_i32 = arith.constant 0 : i32
    %c0_i32_0 = arith.constant 0 : i32
    %c0_i32_1 = arith.constant 0 : i32
    return %c0_i32, %c0_i32_0 : i32, i32
  }
  func.func @transform_8(%arg0: i32) -> (i32, i32) {
    %c0_i32 = arith.constant 0 : i32
    %c0_i32_0 = arith.constant 0 : i32
    %c0_i32_1 = arith.constant 0 : i32
    return %c0_i32, %c0_i32_0 : i32, i32
  }
  func.func @transform_9(%arg0: i32) -> (i32, i32) {
    %c0_i32 = arith.constant 0 : i32
    %c0_i32_0 = arith.constant 0 : i32
    %c0_i32_1 = arith.constant 0 : i32
    return %c0_i32, %c0_i32_0 : i32, i32
  }
  func.func @transform_10(%arg0: i32) -> (i32, i32, i32) {
    %c0_i32 = arith.constant 0 : i32
    %c0_i32_0 = arith.constant 0 : i32
    %c0_i32_1 = arith.constant 0 : i32
    return %arg0, %c0_i32, %c0_i32_0 : i32, i32, i32
  }
  func.func @transform_11(%arg0: i32) -> (i32, i32, i32, i32) {
    %c0_i32 = arith.constant 0 : i32
    %c0_i32_0 = arith.constant 0 : i32
    %c0_i32_1 = arith.constant 0 : i32
    %c0_i32_2 = arith.constant 0 : i32
    return %arg0, %c0_i32, %c0_i32_0, %c0_i32_1 : i32, i32, i32, i32
  }
}

</mosaic_0001>

<llo_original>
// kernel: tpu_custom_call.1
$region0: #{tpu_custom_call.1}
  #allocation0 [shape = 'u32[]', space=smem, size = 0x4, offset = 0x4, fixed_abs, tag = 'smem constant byte address 0x4 - core index']
  #allocation1 [shape = 'u32[72,128]{1,0:T(1,128)}', space=vmem, size = 0x9000, scoped, tag = 'internal scratch']
  #allocation2 [shape = 'bf16[1,8,32]{2,1,0:T(8,128)(2,1)}', space=vmem, size = 0x800, scoped, tag = 'scratch operand']
  %s0 = inlined_call_operand.vmem [shape: f32[2,8,384], index: 0, kind: input, shape index: {}]
  %s1 = inlined_call_operand.vmem [shape: bf16[2,8,384], index: 1, kind: input, shape index: {}]
  %s2 = inlined_call_operand.vmem [shape: bf16[2,8,384], index: 2, kind: input, shape index: {}]
  %s3 = inlined_call_operand.vmem [shape: bf16[2,8,8], index: 3, kind: input, shape index: {}]
  %s4 = inlined_call_operand.vmem [shape: bf16[384,32], index: 4, kind: input, shape index: {}]
  %s5 = inlined_call_operand.vmem [shape: bf16[384,32], index: 5, kind: input, shape index: {}]
  %s6 = inlined_call_operand.vmem [shape: bf16[384,32], index: 6, kind: input, shape index: {}]
  %s7 = inlined_call_operand.vmem [shape: bf16[32,384], index: 7, kind: input, shape index: {}]
  %s8 = inlined_call_operand.vmem [shape: f32[1,384], index: 8, kind: input, shape index: {}]
  %s9 = inlined_call_operand.vmem [shape: f32[1,384], index: 9, kind: input, shape index: {}]
  %s10 = inlined_call_operand.hbm [shape: f32[2,8,384], index: 10, kind: output, shape index: {0}]
  %s11 = inlined_call_operand.hbm [shape: bf16[2,2,8,8], index: 11, kind: output, shape index: {1}]
  %12 = xla_tuple %s10, %s11
  %s13 = sld [smem:[#allocation0]]
  $region81: #{tpu_custom_call.1} parent=0
    _
  %s15 = ssub.s32 1, %s13
  %s16 = scalar_select 0, %s15, %s13
  $region1: #{tpu_custom_call.1} parent=0
    #allocation3 [shape = 'u8[24576]{0}', space=vmem, size = 0x6000, scoped, tag = 'output window, operand 0']
    #allocation4 [shape = 's32[2]{0}', space=sflag, size = 0x8, scoped, tag = 'scoped memory for tpu_custom_call.1']
    #allocation5 [shape = 'u8[8192]{0}', space=vmem, size = 0x2000, scoped, tag = 'output window, operand 1']
    #allocation6 [shape = 's32[2]{0}', space=sflag, size = 0x8, scoped, tag = 'scoped memory for tpu_custom_call.1']
    %17 = vsyncpa [#allocation4], 0
    %s18 = scalar_lea.sflag [#allocation4], 1
    %19 = vsyncpa %s18, 0
    %20 = vsyncpa [#allocation6], 0
    %s21 = scalar_lea.sflag [#allocation6], 1
    %22 = vsyncpa %s21, 0
    loop: start=0, step=1, limit=4
    $region2: #{tpu_custom_call.1} parent=1 // loop_pre_header
      _
    $region3: #{tpu_custom_call.1} parent=1 // loop_header
      %s24 = sphi 0, %s28
      %p25 = scmp.ge.s32.totalorder %s24, 4
      %s34 = sphi 0, %s36
      %s37 = sphi 0, %s34
      %s38 = sphi 0, %s37
      %s54 = sphi 0, %s38
      %s60 = sphi 0, %s62
      %s63 = sphi 0, %s60
      %s64 = sphi 0, %s63
      %s80 = sphi 0, %s64
      %s86 = sphi 0, %s88
      %s89 = sphi 0, %s86
      %s90 = sphi 0, %s89
      %s106 = sphi 0, %s90
      %s112 = sphi 0, %s114
      %s115 = sphi 0, %s112
      %s116 = sphi 0, %s115
      %s132 = sphi 0, %s116
      %s136 = sphi 0, %s136
      %s138 = sphi 0, %s136
      %s139 = sphi 0, %s138
      %s153 = sphi 0, %s139
      %s157 = sphi 0, %s157
      %s159 = sphi 0, %s157
      %s160 = sphi 0, %s159
      %s174 = sphi 0, %s160
      %s178 = sphi 0, %s178
      %s180 = sphi 0, %s178
      %s181 = sphi 0, %s180
      %s195 = sphi 0, %s181
      %s199 = sphi 0, %s199
      %s201 = sphi 0, %s199
      %s202 = sphi 0, %s201
      %s216 = sphi 0, %s202
      %s220 = sphi 0, %s220
      %s222 = sphi 0, %s220
      %s223 = sphi 0, %s222
      %s237 = sphi 0, %s223
      %s241 = sphi 0, %s241
      %s243 = sphi 0, %s241
      %s244 = sphi 0, %s243
      %s258 = sphi 0, %s244
      %s264 = sphi 0, %s266
      %s267 = sphi 0, %s264
      %s268 = sphi 0, %s267
      %s284 = sphi 0, %s268
      %s290 = sphi 0, %s292
      %s293 = sphi 0, %s290
      %s294 = sphi 0, %s293
      %s310 = sphi 0, %s294
    $region4: #{tpu_custom_call.1} parent=1 // loop_header_branch
      %27 = sbr.rel (%p25) target = $region8
    $region5: #{tpu_custom_call.1} parent=1 // loop_body
      %s29 = ssub.s32 %s24, 1
      %s30 = ssub.s32 %s24, 2
      %s31 = sadd.s32 %s24, 1
      %s32 = ssub.s32 %s24, %s31
      %p33 = scmp.eq.s32.totalorder %s32, 0
      %s35 = sadd.s32 %s34, 1
      %s36 = scalar_select %p33, %s34, %s35
      %p39 = pneg %p33
      %p40 = scmp.eq.s32.totalorder %s24, 1
      %p41 = por %p39, %p40
      %p42 = scmp.ne.s32.totalorder %s34, %s37
      %p43 = scmp.eq.s32.totalorder %s24, 0
      %p44 = por %p42, %p43
      %p45 = scmp.ne.s32.totalorder %s34, %s37
      %p46 = scmp.eq.s32.totalorder %s29, 1
      %p47 = por %p45, %p46
      %p48 = scmp.ne.s32.totalorder %s37, %s38
      %p49 = scmp.eq.s32.totalorder %s29, 0
      %p50 = por %p48, %p49
      %p51 = scmp.ne.s32.totalorder %s37, %s38
      %p52 = scmp.eq.s32.totalorder %s30, 1
      %p53 = por %p51, %p52
      %p55 = scmp.ne.s32.totalorder %s38, %s54
      %p56 = scmp.eq.s32.totalorder %s30, 0
      %p57 = por %p55, %p56
      %s58 = ssub.s32 %s24, %s31
      %p59 = scmp.eq.s32.totalorder %s58, 0
      %s61 = sadd.s32 %s60, 1
      %s62 = scalar_select %p59, %s60, %s61
      %p65 = pneg %p59
      %p66 = scmp.eq.s32.totalorder %s24, 1
      %p67 = por %p65, %p66
      %p68 = scmp.ne.s32.totalorder %s60, %s63
      %p69 = scmp.eq.s32.totalorder %s24, 0
      %p70 = por %p68, %p69
      %p71 = scmp.ne.s32.totalorder %s60, %s63
      %p72 = scmp.eq.s32.totalorder %s29, 1
      %p73 = por %p71, %p72
      %p74 = scmp.ne.s32.totalorder %s63, %s64
      %p75 = scmp.eq.s32.totalorder %s29, 0
      %p76 = por %p74, %p75
      %p77 = scmp.ne.s32.totalorder %s63, %s64
      %p78 = scmp.eq.s32.totalorder %s30, 1
      %p79 = por %p77, %p78
      %p81 = scmp.ne.s32.totalorder %s64, %s80
      %p82 = scmp.eq.s32.totalorder %s30, 0
      %p83 = por %p81, %p82
      %s84 = ssub.s32 %s24, %s31
      %p85 = scmp.eq.s32.totalorder %s84, 0
      %s87 = sadd.s32 %s86, 1
      %s88 = scalar_select %p85, %s86, %s87
      %p91 = pneg %p85
      %p92 = scmp.eq.s32.totalorder %s24, 1
      %p93 = por %p91, %p92
      %p94 = scmp.ne.s32.totalorder %s86, %s89
      %p95 = scmp.eq.s32.totalorder %s24, 0
      %p96 = por %p94, %p95
      %p97 = scmp.ne.s32.totalorder %s86, %s89
      %p98 = scmp.eq.s32.totalorder %s29, 1
      %p99 = por %p97, %p98
      %p100 = scmp.ne.s32.totalorder %s89, %s90
      %p101 = scmp.eq.s32.totalorder %s29, 0
      %p102 = por %p100, %p101
      %p103 = scmp.ne.s32.totalorder %s89, %s90
      %p104 = scmp.eq.s32.totalorder %s30, 1
      %p105 = por %p103, %p104
      %p107 = scmp.ne.s32.totalorder %s90, %s106
      %p108 = scmp.eq.s32.totalorder %s30, 0
      %p109 = por %p107, %p108
      %s110 = ssub.s32 %s24, %s31
      %p111 = scmp.eq.s32.totalorder %s110, 0
      %s113 = sadd.s32 %s112, 1
      %s114 = scalar_select %p111, %s112, %s113
      %p117 = pneg %p111
      %p118 = scmp.eq.s32.totalorder %s24, 1
      %p119 = por %p117, %p118
      %p120 = scmp.ne.s32.totalorder %s112, %s115
      %p121 = scmp.eq.s32.totalorder %s24, 0
      %p122 = por %p120, %p121
      %p123 = scmp.ne.s32.totalorder %s112, %s115
      %p124 = scmp.eq.s32.totalorder %s29, 1
      %p125 = por %p123, %p124
      %p126 = scmp.ne.s32.totalorder %s115, %s116
      %p127 = scmp.eq.s32.totalorder %s29, 0
      %p128 = por %p126, %p127
      %p129 = scmp.ne.s32.totalorder %s115, %s116
      %p130 = scmp.eq.s32.totalorder %s30, 1
      %p131 = por %p129, %p130
      %p133 = scmp.ne.s32.totalorder %s116, %s132
      %p134 = scmp.eq.s32.totalorder %s30, 0
      %p135 = por %p133, %p134
      %s137 = sadd.s32 %s136, 1
      %p140 = scmp.eq.s32.totalorder %s24, 1
      %p141 = scmp.ne.s32.totalorder %s136, %s138
      %p142 = scmp.eq.s32.totalorder %s24, 0
      %p143 = por %p141, %p142
      %p144 = scmp.ne.s32.totalorder %s136, %s138
      %p145 = scmp.eq.s32.totalorder %s29, 1
      %p146 = por %p144, %p145
      %p147 = scmp.ne.s32.totalorder %s138, %s139
      %p148 = scmp.eq.s32.totalorder %s29, 0
      %p149 = por %p147, %p148
      %p150 = scmp.ne.s32.totalorder %s138, %s139
      %p151 = scmp.eq.s32.totalorder %s30, 1
      %p152 = por %p150, %p151
      %p154 = scmp.ne.s32.totalorder %s139, %s153
      %p155 = scmp.eq.s32.totalorder %s30, 0
      %p156 = por %p154, %p155
      %s158 = sadd.s32 %s157, 1
      %p161 = scmp.eq.s32.totalorder %s24, 1
      %p162 = scmp.ne.s32.totalorder %s157, %s159
      %p163 = scmp.eq.s32.totalorder %s24, 0
      %p164 = por %p162, %p163
      %p165 = scmp.ne.s32.totalorder %s157, %s159
      %p166 = scmp.eq.s32.totalorder %s29, 1
      %p167 = por %p165, %p166
      %p168 = scmp.ne.s32.totalorder %s159, %s160
      %p169 = scmp.eq.s32.totalorder %s29, 0
      %p170 = por %p168, %p169
      %p171 = scmp.ne.s32.totalorder %s159, %s160
      %p172 = scmp.eq.s32.totalorder %s30, 1
      %p173 = por %p171, %p172
      %p175 = scmp.ne.s32.totalorder %s160, %s174
      %p176 = scmp.eq.s32.totalorder %s30, 0
      %p177 = por %p175, %p176
      %s179 = sadd.s32 %s178, 1
      %p182 = scmp.eq.s32.totalorder %s24, 1
      %p183 = scmp.ne.s32.totalorder %s178, %s180
      %p184 = scmp.eq.s32.totalorder %s24, 0
      %p185 = por %p183, %p184
      %p186 = scmp.ne.s32.totalorder %s178, %s180
      %p187 = scmp.eq.s32.totalorder %s29, 1
      %p188 = por %p186, %p187
      %p189 = scmp.ne.s32.totalorder %s180, %s181
      %p190 = scmp.eq.s32.totalorder %s29, 0
      %p191 = por %p189, %p190
      %p192 = scmp.ne.s32.totalorder %s180, %s181
      %p193 = scmp.eq.s32.totalorder %s30, 1
      %p194 = por %p192, %p193
      %p196 = scmp.ne.s32.totalorder %s181, %s195
      %p197 = scmp.eq.s32.totalorder %s30, 0
      %p198 = por %p196, %p197
      %s200 = sadd.s32 %s199, 1
      %p203 = scmp.eq.s32.totalorder %s24, 1
      %p204 = scmp.ne.s32.totalorder %s199, %s201
      %p205 = scmp.eq.s32.totalorder %s24, 0
      %p206 = por %p204, %p205
      %p207 = scmp.ne.s32.totalorder %s199, %s201
      %p208 = scmp.eq.s32.totalorder %s29, 1
      %p209 = por %p207, %p208
      %p210 = scmp.ne.s32.totalorder %s201, %s202
      %p211 = scmp.eq.s32.totalorder %s29, 0
      %p212 = por %p210, %p211
      %p213 = scmp.ne.s32.totalorder %s201, %s202
      %p214 = scmp.eq.s32.totalorder %s30, 1
      %p215 = por %p213, %p214
      %p217 = scmp.ne.s32.totalorder %s202, %s216
      %p218 = scmp.eq.s32.totalorder %s30, 0
      %p219 = por %p217, %p218
      %s221 = sadd.s32 %s220, 1
      %p224 = scmp.eq.s32.totalorder %s24, 1
      %p225 = scmp.ne.s32.totalorder %s220, %s222
      %p226 = scmp.eq.s32.totalorder %s24, 0
      %p227 = por %p225, %p226
      %p228 = scmp.ne.s32.totalorder %s220, %s222
      %p229 = scmp.eq.s32.totalorder %s29, 1
      %p230 = por %p228, %p229
      %p231 = scmp.ne.s32.totalorder %s222, %s223
      %p232 = scmp.eq.s32.totalorder %s29, 0
      %p233 = por %p231, %p232
      %p234 = scmp.ne.s32.totalorder %s222, %s223
      %p235 = scmp.eq.s32.totalorder %s30, 1
      %p236 = por %p234, %p235
      %p238 = scmp.ne.s32.totalorder %s223, %s237
      %p239 = scmp.eq.s32.totalorder %s30, 0
      %p240 = por %p238, %p239
      %s242 = sadd.s32 %s241, 1
      %p245 = scmp.eq.s32.totalorder %s24, 1
      %p246 = scmp.ne.s32.totalorder %s241, %s243
      %p247 = scmp.eq.s32.totalorder %s24, 0
      %p248 = por %p246, %p247
      %p249 = scmp.ne.s32.totalorder %s241, %s243
      %p250 = scmp.eq.s32.totalorder %s29, 1
      %p251 = por %p249, %p250
      %p252 = scmp.ne.s32.totalorder %s243, %s244
      %p253 = scmp.eq.s32.totalorder %s29, 0
      %p254 = por %p252, %p253
      %p255 = scmp.ne.s32.totalorder %s243, %s244
      %p256 = scmp.eq.s32.totalorder %s30, 1
      %p257 = por %p255, %p256
      %p259 = scmp.ne.s32.totalorder %s244, %s258
      %p260 = scmp.eq.s32.totalorder %s30, 0
      %p261 = por %p259, %p260
      %s262 = ssub.s32 %s24, %s31
      %p263 = scmp.eq.s32.totalorder %s262, 0
      %s265 = sadd.s32 %s264, 1
      %s266 = scalar_select %p263, %s264, %s265
      %p269 = pneg %p263
      %p270 = scmp.eq.s32.totalorder %s24, 1
      %p271 = por %p269, %p270
      %p272 = scmp.ne.s32.totalorder %s264, %s267
      %p273 = scmp.eq.s32.totalorder %s24, 0
      %p274 = por %p272, %p273
      %p275 = scmp.ne.s32.totalorder %s264, %s267
      %p276 = scmp.eq.s32.totalorder %s29, 1
      %p277 = por %p275, %p276
      %p278 = scmp.ne.s32.totalorder %s267, %s268
      %p279 = scmp.eq.s32.totalorder %s29, 0
      %p280 = por %p278, %p279
      %p281 = scmp.ne.s32.totalorder %s267, %s268
      %p282 = scmp.eq.s32.totalorder %s30, 1
      %p283 = por %p281, %p282
      %p285 = scmp.ne.s32.totalorder %s268, %s284
      %p286 = scmp.eq.s32.totalorder %s30, 0
      %p287 = por %p285, %p286
      %s288 = ssub.s32 %s24, %s31
      %p289 = scmp.eq.s32.totalorder %s288, 0
      %s291 = sadd.s32 %s290, 1
      %s292 = scalar_select %p289, %s290, %s291
      %p295 = pneg %p289
      %p296 = scmp.eq.s32.totalorder %s24, 1
      %p297 = por %p295, %p296
      %p298 = scmp.ne.s32.totalorder %s290, %s293
      %p299 = scmp.eq.s32.totalorder %s24, 0
      %p300 = por %p298, %p299
      %p301 = scmp.ne.s32.totalorder %s290, %s293
      %p302 = scmp.eq.s32.totalorder %s29, 1
      %p303 = por %p301, %p302
      %p304 = scmp.ne.s32.totalorder %s293, %s294
      %p305 = scmp.eq.s32.totalorder %s29, 0
      %p306 = por %p304, %p305
      %p307 = scmp.ne.s32.totalorder %s293, %s294
      %p308 = scmp.eq.s32.totalorder %s30, 1
      %p309 = por %p307, %p308
      %p311 = scmp.ne.s32.totalorder %s294, %s310
      %p312 = scmp.eq.s32.totalorder %s30, 0
      %p313 = por %p311, %p312
      %p314 = scmp.le.s32.totalorder 1, %s24
      %p315 = scmp.lt.s32.totalorder %s24, 3
      %p316 = pnand %p314, %p315
      %p317 = pneg %p316
      // Predicated region
      $region9: #{tpu_custom_call.1} parent=5 // pred_check
        _
      $region10: #{tpu_custom_call.1} parent=5 // pred_check_branch
        %319 = sbr.rel (%p316) target = $region12
      $region11: #{tpu_custom_call.1} parent=5 // pred_region
        %s320 = ssub.s32 %s24, 1
        // Predicated region
        $region13: #{tpu_custom_call.1} parent=11 // pred_check
          %p321 = pneg %p149
        $region14: #{tpu_custom_call.1} parent=11 // pred_check_branch
          %323 = sbr.rel (%p321) target = $region16
        $region15: #{tpu_custom_call.1} parent=11 // pred_region
          _
        $region16: #{tpu_custom_call.1} parent=11 // pred_fallthru
          _
        // Predicated region
        $region17: #{tpu_custom_call.1} parent=11 // pred_check
          %p324 = pneg %p170
        $region18: #{tpu_custom_call.1} parent=11 // pred_check_branch
          %326 = sbr.rel (%p324) target = $region20
        $region19: #{tpu_custom_call.1} parent=11 // pred_region
          _
        $region20: #{tpu_custom_call.1} parent=11 // pred_fallthru
          _
        // Predicated region
        $region21: #{tpu_custom_call.1} parent=11 // pred_check
          %p327 = pneg %p191
        $region22: #{tpu_custom_call.1} parent=11 // pred_check_branch
          %329 = sbr.rel (%p327) target = $region24
        $region23: #{tpu_custom_call.1} parent=11 // pred_region
          _
        $region24: #{tpu_custom_call.1} parent=11 // pred_fallthru
          _
        // Predicated region
        $region25: #{tpu_custom_call.1} parent=11 // pred_check
          %p330 = pneg %p212
        $region26: #{tpu_custom_call.1} parent=11 // pred_check_branch
          %332 = sbr.rel (%p330) target = $region28
        $region27: #{tpu_custom_call.1} parent=11 // pred_region
          _
        $region28: #{tpu_custom_call.1} parent=11 // pred_fallthru
          _
        // Predicated region
        $region29: #{tpu_custom_call.1} parent=11 // pred_check
          %p333 = pneg %p233
        $region30: #{tpu_custom_call.1} parent=11 // pred_check_branch
          %335 = sbr.rel (%p333) target = $region32
        $region31: #{tpu_custom_call.1} parent=11 // pred_region
          _
        $region32: #{tpu_custom_call.1} parent=11 // pred_fallthru
          _
        // Predicated region
        $region33: #{tpu_custom_call.1} parent=11 // pred_check
          %p336 = pneg %p254
        $region34: #{tpu_custom_call.1} parent=11 // pred_check_branch
          %338 = sbr.rel (%p336) target = $region36
        $region35: #{tpu_custom_call.1} parent=11 // pred_region
          _
        $region36: #{tpu_custom_call.1} parent=11 // pred_fallthru
          _
      $region12: #{tpu_custom_call.1} parent=5 // pred_fallthru
        _
      %p339 = scmp.lt.s32.totalorder %s24, 2
      // Predicated region
      $region37: #{tpu_custom_call.1} parent=5 // pred_check
        %p340 = pneg %p339
      $region38: #{tpu_custom_call.1} parent=5 // pred_check_branch
        %342 = sbr.rel (%p340) target = $region40
      $region39: #{tpu_custom_call.1} parent=5 // pred_region
        // Predicated region
        $region41: #{tpu_custom_call.1} parent=39 // pred_check
          %p343 = pneg %p44
        $region42: #{tpu_custom_call.1} parent=39 // pred_check_branch
          %345 = sbr.rel (%p343) target = $region44
        $region43: #{tpu_custom_call.1} parent=39 // pred_region
          %p346 = scmp.lt.s32.totalorder %s24, 1
          %s347 = scalar_select %p346, %s24, 1
          %s348 = smul.addr %s347, 3
          %s349 = smul.addr %s348, 8
          %s350 = scalar_lea.vmem %s0, %s349
        $region44: #{tpu_custom_call.1} parent=39 // pred_fallthru
          _
        // Predicated region
        $region45: #{tpu_custom_call.1} parent=39 // pred_check
          %p351 = pneg %p70
        $region46: #{tpu_custom_call.1} parent=39 // pred_check_branch
          %353 = sbr.rel (%p351) target = $region48
        $region47: #{tpu_custom_call.1} parent=39 // pred_region
          %p354 = scmp.lt.s32.totalorder %s24, 1
          %s355 = scalar_select %p354, %s24, 1
          %s356 = smul.addr %s355, 3
          %s357 = smul.addr %s356, 4
          %s358 = scalar_lea.vmem %s1, %s357
        $region48: #{tpu_custom_call.1} parent=39 // pred_fallthru
          _
        // Predicated region
        $region49: #{tpu_custom_call.1} parent=39 // pred_check
          %p359 = pneg %p96
        $region50: #{tpu_custom_call.1} parent=39 // pred_check_branch
          %361 = sbr.rel (%p359) target = $region52
        $region51: #{tpu_custom_call.1} parent=39 // pred_region
          %p362 = scmp.lt.s32.totalorder %s24, 1
          %s363 = scalar_select %p362, %s24, 1
          %s364 = smul.addr %s363, 3
          %s365 = smul.addr %s364, 4
          %s366 = scalar_lea.vmem %s2, %s365
        $region52: #{tpu_custom_call.1} parent=39 // pred_fallthru
          _
        // Predicated region
        $region53: #{tpu_custom_call.1} parent=39 // pred_check
          %p367 = pneg %p122
        $region54: #{tpu_custom_call.1} parent=39 // pred_check_branch
          %369 = sbr.rel (%p367) target = $region56
        $region55: #{tpu_custom_call.1} parent=39 // pred_region
          %p370 = scmp.lt.s32.totalorder %s24, 1
          %s371 = scalar_select %p370, %s24, 1
          %s372 = smul.addr %s371, 4
          %s373 = scalar_lea.vmem %s3, %s372
        $region56: #{tpu_custom_call.1} parent=39 // pred_fallthru
          _
      $region40: #{tpu_custom_call.1} parent=5 // pred_fallthru
        _
      %p374 = scmp.le.s32.totalorder 1, %s24
      %p375 = scmp.lt.s32.totalorder %s24, 3
      %p376 = pnand %p374, %p375
      %p377 = pneg %p376
      // Predicated region
      $region57: #{tpu_custom_call.1} parent=5 // pred_check
        _
      $region58: #{tpu_custom_call.1} parent=5 // pred_check_branch
        %379 = sbr.rel (%p376) target = $region60
      $region59: #{tpu_custom_call.1} parent=5 // pred_region
        %s380 = ssub.s32 %s24, 1
        %p381 = scmp.lt.s32.totalorder %s29, 1
        %s382 = scalar_select %p381, %s29, 1
        %s383 = smul.addr %s382, 3
        %s384 = smul.addr %s383, 8
        %s385 = scalar_lea.vmem %s0, %s384
        %p386 = pneg %p50
        %p387 = pneg %p47
        %p388 = scmp.lt.s32.totalorder %s29, 1
        %s389 = scalar_select %p388, %s29, 1
        %s390 = smul.addr %s389, 3
        %s391 = smul.addr %s390, 4
        %s392 = scalar_lea.vmem %s1, %s391
        %p393 = pneg %p76
        %p394 = pneg %p73
        %p395 = scmp.lt.s32.totalorder %s29, 1
        %s396 = scalar_select %p395, %s29, 1
        %s397 = smul.addr %s396, 3
        %s398 = smul.addr %s397, 4
        %s399 = scalar_lea.vmem %s2, %s398
        %p400 = pneg %p102
        %p401 = pneg %p99
        %p402 = scmp.lt.s32.totalorder %s29, 1
        %s403 = scalar_select %p402, %s29, 1
        %s404 = smul.addr %s403, 4
        %s405 = scalar_lea.vmem %s3, %s404
        %p406 = pneg %p128
        %p407 = pneg %p125
        %p408 = pneg %p149
        %p409 = pneg %p146
        %p410 = pneg %p170
        %p411 = pneg %p167
        %p412 = pneg %p191
        %p413 = pneg %p188
        %p414 = pneg %p212
        %p415 = pneg %p209
        %p416 = pneg %p233
        %p417 = pneg %p230
        %p418 = pneg %p254
        %p419 = pneg %p251
        %p420 = pneg %p280
        %p421 = pneg %p277
        %s422 = sand.u32 %s267, 1
        %s423 = scalar_lea.sflag [#allocation4], %s422
        %s424 = sand.u32 %s267, 1
        %s425 = smul.addr %s424, 24
        %s426 = scalar_lea.vmem [#allocation3], %s425
        %p427 = pneg %p306
        %p428 = pneg %p303
        %s429 = sand.u32 %s293, 1
        %s430 = scalar_lea.sflag [#allocation6], %s429
        %s431 = sand.u32 %s293, 1
        %s432 = smul.addr %s431, 8
        %s433 = scalar_lea.vmem [#allocation5], %s432
        %p434 = scmp.lt.s32.totalorder %s29, 1
        %s435 = scalar_select %p434, %s29, 1
        %s436 = smul.addr %s435, 3
        %s437 = smul.addr %s436, 8
        %s438 = scalar_lea.vmem %s0, %s437
        %p439 = scmp.lt.s32.totalorder %s29, 1
        %s440 = scalar_select %p439, %s29, 1
        %s441 = smul.addr %s440, 3
        %s442 = smul.addr %s441, 4
        %s443 = scalar_lea.vmem %s1, %s442
        %p444 = scmp.lt.s32.totalorder %s29, 1
        %s445 = scalar_select %p444, %s29, 1
        %s446 = smul.addr %s445, 3
        %s447 = smul.addr %s446, 4
        %s448 = scalar_lea.vmem %s2, %s447
        %p449 = scmp.lt.s32.totalorder %s29, 1
        %s450 = scalar_select %p449, %s29, 1
        %s451 = smul.addr %s450, 4
        %s452 = scalar_lea.vmem %s3, %s451
        %v454 = vld [vmem:[%s438] sm:$0xff]
        %v455 = vld [vmem:[%s438 + $0x8] sm:$0xff]
        %v456 = vld [vmem:[%s438 + $0x10] sm:$0xff]
        %v457 = vld [vmem:[%s443] sm:$0xff]
        %v458 = vld [vmem:[%s443 + $0x8] sm:$0xf]
        %v459 = vld [vmem:[%s448] sm:$0xff]
        %v460 = vld [vmem:[%s448 + $0x8] sm:$0xf]
        %v461 = vpack.c.bf16 %v454, %v454
        %v462 = vpack.c.bf16 %v455, %v455
        %v463 = vpack.c.bf16 %v456, %v456
        %v464 = vld [vmem:[%s4] sm:$0xf]
        %v465 = vld [vmem:[%s4 + $0x4] sm:$0xf]
        %v466 = vld [vmem:[%s4 + $0x8] sm:$0xf]
        %v467 = vld [vmem:[%s4 + $0xc] sm:$0xf]
        %v468 = vld [vmem:[%s4 + $0x10] sm:$0xf]
        %v469 = vld [vmem:[%s4 + $0x14] sm:$0xf]
        %v470 = vld [vmem:[%s4 + $0x18] sm:$0xf]
        %v471 = vld [vmem:[%s4 + $0x1c] sm:$0xf]
        %v472 = vld [vmem:[%s4 + $0x20] sm:$0xf]
        %v473 = vld [vmem:[%s4 + $0x24] sm:$0xf]
        %v474 = vld [vmem:[%s4 + $0x28] sm:$0xf]
        %v475 = vld [vmem:[%s4 + $0x2c] sm:$0xf]
        %v476 = vld [vmem:[%s4 + $0x30] sm:$0xf]
        %v477 = vld [vmem:[%s4 + $0x34] sm:$0xf]
        %v478 = vld [vmem:[%s4 + $0x38] sm:$0xf]
        %v479 = vld [vmem:[%s4 + $0x3c] sm:$0xf]
        %v480 = vld [vmem:[%s4 + $0x40] sm:$0xf]
        %v481 = vld [vmem:[%s4 + $0x44] sm:$0xf]
        %v482 = vld [vmem:[%s4 + $0x48] sm:$0xf]
        %v483 = vld [vmem:[%s4 + $0x4c] sm:$0xf]
        %v484 = vld [vmem:[%s4 + $0x50] sm:$0xf]
        %v485 = vld [vmem:[%s4 + $0x54] sm:$0xf]
        %v486 = vld [vmem:[%s4 + $0x58] sm:$0xf]
        %v487 = vld [vmem:[%s4 + $0x5c] sm:$0xf]
        %v488 = vld [vmem:[%s4 + $0x60] sm:$0xf]
        %v489 = vld [vmem:[%s4 + $0x64] sm:$0xf]
        %v490 = vld [vmem:[%s4 + $0x68] sm:$0xf]
        %v491 = vld [vmem:[%s4 + $0x6c] sm:$0xf]
        %v492 = vld [vmem:[%s4 + $0x70] sm:$0xf]
        %v493 = vld [vmem:[%s4 + $0x74] sm:$0xf]
        %v494 = vld [vmem:[%s4 + $0x78] sm:$0xf]
        %v495 = vld [vmem:[%s4 + $0x7c] sm:$0xf]
        %v496 = vld [vmem:[%s4 + $0x80] sm:$0xf]
        %v497 = vld [vmem:[%s4 + $0x84] sm:$0xf]
        %v498 = vld [vmem:[%s4 + $0x88] sm:$0xf]
        %v499 = vld [vmem:[%s4 + $0x8c] sm:$0xf]
        %v500 = vld [vmem:[%s4 + $0x90] sm:$0xf]
        %v501 = vld [vmem:[%s4 + $0x94] sm:$0xf]
        %v502 = vld [vmem:[%s4 + $0x98] sm:$0xf]
        %v503 = vld [vmem:[%s4 + $0x9c] sm:$0xf]
        %v504 = vld [vmem:[%s4 + $0xa0] sm:$0xf]
        %v505 = vld [vmem:[%s4 + $0xa4] sm:$0xf]
        %v506 = vld [vmem:[%s4 + $0xa8] sm:$0xf]
        %v507 = vld [vmem:[%s4 + $0xac] sm:$0xf]
        %v508 = vld [vmem:[%s4 + $0xb0] sm:$0xf]
        %v509 = vld [vmem:[%s4 + $0xb4] sm:$0xf]
        %v510 = vld [vmem:[%s4 + $0xb8] sm:$0xf]
        %v511 = vld [vmem:[%s4 + $0xbc] sm:$0xf]
        %v560 = vunpack.c.l.b16 %v464
        %v561 = vunpack.c.l.b16 %v465
        %v562 = vunpack.c.l.b16 %v466
        %v563 = vunpack.c.l.b16 %v467
        %v564 = vunpack.c.l.b16 %v468
        %v565 = vunpack.c.l.b16 %v469
        %v566 = vunpack.c.l.b16 %v470
        %v567 = vunpack.c.l.b16 %v471
        %v568 = vunpack.c.l.b16 %v472
        %v569 = vunpack.c.l.b16 %v473
        %v570 = vunpack.c.l.b16 %v474
        %v571 = vunpack.c.l.b16 %v475
        %v572 = vunpack.c.l.b16 %v476
        %v573 = vunpack.c.l.b16 %v477
        %v574 = vunpack.c.l.b16 %v478
        %v575 = vunpack.c.l.b16 %v479
        %v576 = vunpack.c.l.b16 %v480
        %v577 = vunpack.c.l.b16 %v481
        %v578 = vunpack.c.l.b16 %v482
        %v579 = vunpack.c.l.b16 %v483
        %v580 = vunpack.c.l.b16 %v484
        %v581 = vunpack.c.l.b16 %v485
        %v582 = vunpack.c.l.b16 %v486
        %v583 = vunpack.c.l.b16 %v487
        %v584 = vunpack.c.l.b16 %v488
        %v585 = vunpack.c.l.b16 %v489
        %v586 = vunpack.c.l.b16 %v490
        %v587 = vunpack.c.l.b16 %v491
        %v588 = vunpack.c.l.b16 %v492
        %v589 = vunpack.c.l.b16 %v493
        %v590 = vunpack.c.l.b16 %v494
        %v591 = vunpack.c.l.b16 %v495
        %v592 = vunpack.c.l.b16 %v496
        %v593 = vunpack.c.l.b16 %v497
        %v594 = vunpack.c.l.b16 %v498
        %v595 = vunpack.c.l.b16 %v499
        %v596 = vunpack.c.l.b16 %v500
        %v597 = vunpack.c.l.b16 %v501
        %v598 = vunpack.c.l.b16 %v502
        %v599 = vunpack.c.l.b16 %v503
        %v600 = vunpack.c.l.b16 %v504
        %v601 = vunpack.c.l.b16 %v505
        %v602 = vunpack.c.l.b16 %v506
        %v603 = vunpack.c.l.b16 %v507
        %v604 = vunpack.c.l.b16 %v508
        %v605 = vunpack.c.l.b16 %v509
        %v606 = vunpack.c.l.b16 %v510
        %v607 = vunpack.c.l.b16 %v511
        %v608 = vpack.c.b16 %v561, %v560
        %v609 = vpack.c.b16 %v563, %v562
        %v610 = vpack.c.b16 %v565, %v564
        %v611 = vpack.c.b16 %v567, %v566
        %v612 = vpack.c.b16 %v569, %v568
        %v613 = vpack.c.b16 %v571, %v570
        %v614 = vpack.c.b16 %v573, %v572
        %v615 = vpack.c.b16 %v575, %v574
        %v616 = vpack.c.b16 %v577, %v576
        %v617 = vpack.c.b16 %v579, %v578
        %v618 = vpack.c.b16 %v581, %v580
        %v619 = vpack.c.b16 %v583, %v582
        %v620 = vpack.c.b16 %v585, %v584
        %v621 = vpack.c.b16 %v587, %v586
        %v622 = vpack.c.b16 %v589, %v588
        %v623 = vpack.c.b16 %v591, %v590
        %v624 = vpack.c.b16 %v593, %v592
        %v625 = vpack.c.b16 %v595, %v594
        %v626 = vpack.c.b16 %v597, %v596
        %v627 = vpack.c.b16 %v599, %v598
        %v628 = vpack.c.b16 %v601, %v600
        %v629 = vpack.c.b16 %v603, %v602
        %v630 = vpack.c.b16 %v605, %v604
        %v631 = vpack.c.b16 %v607, %v606
        %656 = vmatpush.bf16.msra.mxu0 %v615
        %657 = vmatpush.bf16.msra.mxu0 %v614
        %658 = vmatpush.bf16.msra.mxu0 %v613
        %659 = vmatpush.bf16.msra.mxu0 %v612
        %660 = vmatpush.bf16.msra.mxu0 %v611
        %661 = vmatpush.bf16.msra.mxu0 %v610
        %662 = vmatpush.bf16.msra.mxu0 %v609
        %663 = vmatpush.bf16.msra.mxu0 %v608
        %664 = vmatmul.bf16.gmra.mxu0 %v461
        %v665 = vpop.f32.mrf.mxu0
        %v666 = vadd.f32 0.0, %v665
        %v667 = vpop.f32.mrf.mxu0
        %668 = vdwg.mxu0
        %669 = vmatpush.bf16.msra.mxu0 %v623
        %670 = vmatpush.bf16.msra.mxu0 %v622
        %671 = vmatpush.bf16.msra.mxu0 %v621
        %672 = vmatpush.bf16.msra.mxu0 %v620
        %673 = vmatpush.bf16.msra.mxu0 %v619
        %674 = vmatpush.bf16.msra.mxu0 %v618
        %675 = vmatpush.bf16.msra.mxu0 %v617
        %676 = vmatpush.bf16.msra.mxu0 %v616
        %677 = vmatmul.bf16.gmra.mxu0 %v462
        %v678 = vpop.f32.mrf.mxu0
        %v679 = vadd.f32 %v666, %v678
        %v680 = vpop.f32.mrf.mxu0
        %681 = vdwg.mxu0
        %682 = vmatpush.bf16.msra.mxu0 %v631
        %683 = vmatpush.bf16.msra.mxu0 %v630
        %684 = vmatpush.bf16.msra.mxu0 %v629
        %685 = vmatpush.bf16.msra.mxu0 %v628
        %686 = vmatpush.bf16.msra.mxu0 %v627
        %687 = vmatpush.bf16.msra.mxu0 %v626
        %688 = vmatpush.bf16.msra.mxu0 %v625
        %689 = vmatpush.bf16.msra.mxu0 %v624
        %690 = vmatmul.bf16.gmra.mxu0 %v463
        %v691 = vpop.f32.mrf.mxu0
        %v692 = vadd.f32 %v679, %v691
        %v693 = vpop.f32.mrf.mxu0
        %694 = vdwg.mxu0
        %v695 = vld [vmem:[%s5] sm:$0xf]
        %v696 = vld [vmem:[%s5 + $0x4] sm:$0xf]
        %v697 = vld [vmem:[%s5 + $0x8] sm:$0xf]
        %v698 = vld [vmem:[%s5 + $0xc] sm:$0xf]
        %v699 = vld [vmem:[%s5 + $0x10] sm:$0xf]
        %v700 = vld [vmem:[%s5 + $0x14] sm:$0xf]
        %v701 = vld [vmem:[%s5 + $0x18] sm:$0xf]
        %v702 = vld [vmem:[%s5 + $0x1c] sm:$0xf]
        %v703 = vld [vmem:[%s5 + $0x20] sm:$0xf]
        %v704 = vld [vmem:[%s5 + $0x24] sm:$0xf]
        %v705 = vld [vmem:[%s5 + $0x28] sm:$0xf]
        %v706 = vld [vmem:[%s5 + $0x2c] sm:$0xf]
        %v707 = vld [vmem:[%s5 + $0x30] sm:$0xf]
        %v708 = vld [vmem:[%s5 + $0x34] sm:$0xf]
        %v709 = vld [vmem:[%s5 + $0x38] sm:$0xf]
        %v710 = vld [vmem:[%s5 + $0x3c] sm:$0xf]
        %v711 = vld [vmem:[%s5 + $0x40] sm:$0xf]
        %v712 = vld [vmem:[%s5 + $0x44] sm:$0xf]
        %v713 = vld [vmem:[%s5 + $0x48] sm:$0xf]
        %v714 = vld [vmem:[%s5 + $0x4c] sm:$0xf]
        %v715 = vld [vmem:[%s5 + $0x50] sm:$0xf]
        %v716 = vld [vmem:[%s5 + $0x54] sm:$0xf]
        %v717 = vld [vmem:[%s5 + $0x58] sm:$0xf]
        %v718 = vld [vmem:[%s5 + $0x5c] sm:$0xf]
        %v719 = vld [vmem:[%s5 + $0x60] sm:$0xf]
        %v720 = vld [vmem:[%s5 + $0x64] sm:$0xf]
        %v721 = vld [vmem:[%s5 + $0x68] sm:$0xf]
        %v722 = vld [vmem:[%s5 + $0x6c] sm:$0xf]
        %v723 = vld [vmem:[%s5 + $0x70] sm:$0xf]
        %v724 = vld [vmem:[%s5 + $0x74] sm:$0xf]
        %v725 = vld [vmem:[%s5 + $0x78] sm:$0xf]
        %v726 = vld [vmem:[%s5 + $0x7c] sm:$0xf]
        %v727 = vld [vmem:[%s5 + $0x80] sm:$0xf]
        %v728 = vld [vmem:[%s5 + $0x84] sm:$0xf]
        %v729 = vld [vmem:[%s5 + $0x88] sm:$0xf]
        %v730 = vld [vmem:[%s5 + $0x8c] sm:$0xf]
        %v731 = vld [vmem:[%s5 + $0x90] sm:$0xf]
        %v732 = vld [vmem:[%s5 + $0x94] sm:$0xf]
        %v733 = vld [vmem:[%s5 + $0x98] sm:$0xf]
        %v734 = vld [vmem:[%s5 + $0x9c] sm:$0xf]
        %v735 = vld [vmem:[%s5 + $0xa0] sm:$0xf]
        %v736 = vld [vmem:[%s5 + $0xa4] sm:$0xf]
        %v737 = vld [vmem:[%s5 + $0xa8] sm:$0xf]
        %v738 = vld [vmem:[%s5 + $0xac] sm:$0xf]
        %v739 = vld [vmem:[%s5 + $0xb0] sm:$0xf]
        %v740 = vld [vmem:[%s5 + $0xb4] sm:$0xf]
        %v741 = vld [vmem:[%s5 + $0xb8] sm:$0xf]
        %v742 = vld [vmem:[%s5 + $0xbc] sm:$0xf]
        %v745 = vunpack.c.l.b16 %v457
        %v746 = vunpack.c.h.b16 %v457
        %v747 = vunpack.c.l.b16 %v458
        %v748 = vpack.c.b16 %v745, %v745
        %v749 = vpack.c.b16 %v746, %v746
        %v750 = vpack.c.b16 %v747, %v747
        %v802 = vunpack.c.l.b16 %v695
        %v803 = vunpack.c.l.b16 %v696
        %v804 = vunpack.c.l.b16 %v697
        %v805 = vunpack.c.l.b16 %v698
        %v806 = vunpack.c.l.b16 %v699
        %v807 = vunpack.c.l.b16 %v700
        %v808 = vunpack.c.l.b16 %v701
        %v809 = vunpack.c.l.b16 %v702
        %v810 = vunpack.c.l.b16 %v703
        %v811 = vunpack.c.l.b16 %v704
        %v812 = vunpack.c.l.b16 %v705
        %v813 = vunpack.c.l.b16 %v706
        %v814 = vunpack.c.l.b16 %v707
        %v815 = vunpack.c.l.b16 %v708
        %v816 = vunpack.c.l.b16 %v709
        %v817 = vunpack.c.l.b16 %v710
        %v818 = vunpack.c.l.b16 %v711
        %v819 = vunpack.c.l.b16 %v712
        %v820 = vunpack.c.l.b16 %v713
        %v821 = vunpack.c.l.b16 %v714
        %v822 = vunpack.c.l.b16 %v715
        %v823 = vunpack.c.l.b16 %v716
        %v824 = vunpack.c.l.b16 %v717
        %v825 = vunpack.c.l.b16 %v718
        %v826 = vunpack.c.l.b16 %v719
        %v827 = vunpack.c.l.b16 %v720
        %v828 = vunpack.c.l.b16 %v721
        %v829 = vunpack.c.l.b16 %v722
        %v830 = vunpack.c.l.b16 %v723
        %v831 = vunpack.c.l.b16 %v724
        %v832 = vunpack.c.l.b16 %v725
        %v833 = vunpack.c.l.b16 %v726
        %v834 = vunpack.c.l.b16 %v727
        %v835 = vunpack.c.l.b16 %v728
        %v836 = vunpack.c.l.b16 %v729
        %v837 = vunpack.c.l.b16 %v730
        %v838 = vunpack.c.l.b16 %v731
        %v839 = vunpack.c.l.b16 %v732
        %v840 = vunpack.c.l.b16 %v733
        %v841 = vunpack.c.l.b16 %v734
        %v842 = vunpack.c.l.b16 %v735
        %v843 = vunpack.c.l.b16 %v736
        %v844 = vunpack.c.l.b16 %v737
        %v845 = vunpack.c.l.b16 %v738
        %v846 = vunpack.c.l.b16 %v739
        %v847 = vunpack.c.l.b16 %v740
        %v848 = vunpack.c.l.b16 %v741
        %v849 = vunpack.c.l.b16 %v742
        %v850 = vpack.c.b16 %v803, %v802
        %v851 = vpack.c.b16 %v805, %v804
        %v852 = vpack.c.b16 %v807, %v806
        %v853 = vpack.c.b16 %v809, %v808
        %v854 = vpack.c.b16 %v811, %v810
        %v855 = vpack.c.b16 %v813, %v812
        %v856 = vpack.c.b16 %v815, %v814
        %v857 = vpack.c.b16 %v817, %v816
        %v858 = vpack.c.b16 %v819, %v818
        %v859 = vpack.c.b16 %v821, %v820
        %v860 = vpack.c.b16 %v823, %v822
        %v861 = vpack.c.b16 %v825, %v824
        %v862 = vpack.c.b16 %v827, %v826
        %v863 = vpack.c.b16 %v829, %v828
        %v864 = vpack.c.b16 %v831, %v830
        %v865 = vpack.c.b16 %v833, %v832
        %v866 = vpack.c.b16 %v835, %v834
        %v867 = vpack.c.b16 %v837, %v836
        %v868 = vpack.c.b16 %v839, %v838
        %v869 = vpack.c.b16 %v841, %v840
        %v870 = vpack.c.b16 %v843, %v842
        %v871 = vpack.c.b16 %v845, %v844
        %v872 = vpack.c.b16 %v847, %v846
        %v873 = vpack.c.b16 %v849, %v848
        %898 = vmatpush.bf16.msra.mxu0 %v857
        %899 = vmatpush.bf16.msra.mxu0 %v856
        %900 = vmatpush.bf16.msra.mxu0 %v855
        %901 = vmatpush.bf16.msra.mxu0 %v854
        %902 = vmatpush.bf16.msra.mxu0 %v853
        %903 = vmatpush.bf16.msra.mxu0 %v852
        %904 = vmatpush.bf16.msra.mxu0 %v851
        %905 = vmatpush.bf16.msra.mxu0 %v850
        %906 = vmatmul.bf16.gmra.mxu0 %v748
        %v907 = vpop.f32.mrf.mxu0
        %v908 = vadd.f32 0.0, %v907
        %v909 = vpop.f32.mrf.mxu0
        %910 = vdwg.mxu0
        %911 = vmatpush.bf16.msra.mxu0 %v865
        %912 = vmatpush.bf16.msra.mxu0 %v864
        %913 = vmatpush.bf16.msra.mxu0 %v863
        %914 = vmatpush.bf16.msra.mxu0 %v862
        %915 = vmatpush.bf16.msra.mxu0 %v861
        %916 = vmatpush.bf16.msra.mxu0 %v860
        %917 = vmatpush.bf16.msra.mxu0 %v859
        %918 = vmatpush.bf16.msra.mxu0 %v858
        %919 = vmatmul.bf16.gmra.mxu0 %v749
        %v920 = vpop.f32.mrf.mxu0
        %v921 = vadd.f32 %v908, %v920
        %v922 = vpop.f32.mrf.mxu0
        %923 = vdwg.mxu0
        %924 = vmatpush.bf16.msra.mxu0 %v873
        %925 = vmatpush.bf16.msra.mxu0 %v872
        %926 = vmatpush.bf16.msra.mxu0 %v871
        %927 = vmatpush.bf16.msra.mxu0 %v870
        %928 = vmatpush.bf16.msra.mxu0 %v869
        %929 = vmatpush.bf16.msra.mxu0 %v868
        %930 = vmatpush.bf16.msra.mxu0 %v867
        %931 = vmatpush.bf16.msra.mxu0 %v866
        %932 = vmatmul.bf16.gmra.mxu0 %v750
        %v933 = vpop.f32.mrf.mxu0
        %v934 = vadd.f32 %v921, %v933
        %v935 = vpop.f32.mrf.mxu0
        %936 = vdwg.mxu0
        %v937 = vld [vmem:[%s6] sm:$0xf]
        %v938 = vld [vmem:[%s6 + $0x4] sm:$0xf]
        %v939 = vld [vmem:[%s6 + $0x8] sm:$0xf]
        %v940 = vld [vmem:[%s6 + $0xc] sm:$0xf]
        %v941 = vld [vmem:[%s6 + $0x10] sm:$0xf]
        %v942 = vld [vmem:[%s6 + $0x14] sm:$0xf]
        %v943 = vld [vmem:[%s6 + $0x18] sm:$0xf]
        %v944 = vld [vmem:[%s6 + $0x1c] sm:$0xf]
        %v945 = vld [vmem:[%s6 + $0x20] sm:$0xf]
        %v946 = vld [vmem:[%s6 + $0x24] sm:$0xf]
        %v947 = vld [vmem:[%s6 + $0x28] sm:$0xf]
        %v948 = vld [vmem:[%s6 + $0x2c] sm:$0xf]
        %v949 = vld [vmem:[%s6 + $0x30] sm:$0xf]
        %v950 = vld [vmem:[%s6 + $0x34] sm:$0xf]
        %v951 = vld [vmem:[%s6 + $0x38] sm:$0xf]
        %v952 = vld [vmem:[%s6 + $0x3c] sm:$0xf]
        %v953 = vld [vmem:[%s6 + $0x40] sm:$0xf]
        %v954 = vld [vmem:[%s6 + $0x44] sm:$0xf]
        %v955 = vld [vmem:[%s6 + $0x48] sm:$0xf]
        %v956 = vld [vmem:[%s6 + $0x4c] sm:$0xf]
        %v957 = vld [vmem:[%s6 + $0x50] sm:$0xf]
        %v958 = vld [vmem:[%s6 + $0x54] sm:$0xf]
        %v959 = vld [vmem:[%s6 + $0x58] sm:$0xf]
        %v960 = vld [vmem:[%s6 + $0x5c] sm:$0xf]
        %v961 = vld [vmem:[%s6 + $0x60] sm:$0xf]
        %v962 = vld [vmem:[%s6 + $0x64] sm:$0xf]
        %v963 = vld [vmem:[%s6 + $0x68] sm:$0xf]
        %v964 = vld [vmem:[%s6 + $0x6c] sm:$0xf]
        %v965 = vld [vmem:[%s6 + $0x70] sm:$0xf]
        %v966 = vld [vmem:[%s6 + $0x74] sm:$0xf]
        %v967 = vld [vmem:[%s6 + $0x78] sm:$0xf]
        %v968 = vld [vmem:[%s6 + $0x7c] sm:$0xf]
        %v969 = vld [vmem:[%s6 + $0x80] sm:$0xf]
        %v970 = vld [vmem:[%s6 + $0x84] sm:$0xf]
        %v971 = vld [vmem:[%s6 + $0x88] sm:$0xf]
        %v972 = vld [vmem:[%s6 + $0x8c] sm:$0xf]
        %v973 = vld [vmem:[%s6 + $0x90] sm:$0xf]
        %v974 = vld [vmem:[%s6 + $0x94] sm:$0xf]
        %v975 = vld [vmem:[%s6 + $0x98] sm:$0xf]
        %v976 = vld [vmem:[%s6 + $0x9c] sm:$0xf]
        %v977 = vld [vmem:[%s6 + $0xa0] sm:$0xf]
        %v978 = vld [vmem:[%s6 + $0xa4] sm:$0xf]
        %v979 = vld [vmem:[%s6 + $0xa8] sm:$0xf]
        %v980 = vld [vmem:[%s6 + $0xac] sm:$0xf]
        %v981 = vld [vmem:[%s6 + $0xb0] sm:$0xf]
        %v982 = vld [vmem:[%s6 + $0xb4] sm:$0xf]
        %v983 = vld [vmem:[%s6 + $0xb8] sm:$0xf]
        %v984 = vld [vmem:[%s6 + $0xbc] sm:$0xf]
        %v987 = vunpack.c.l.b16 %v459
        %v988 = vunpack.c.h.b16 %v459
        %v989 = vunpack.c.l.b16 %v460
        %v990 = vpack.c.b16 %v987, %v987
        %v991 = vpack.c.b16 %v988, %v988
        %v992 = vpack.c.b16 %v989, %v989
        %v1044 = vunpack.c.l.b16 %v937
        %v1045 = vunpack.c.l.b16 %v938
        %v1046 = vunpack.c.l.b16 %v939
        %v1047 = vunpack.c.l.b16 %v940
        %v1048 = vunpack.c.l.b16 %v941
        %v1049 = vunpack.c.l.b16 %v942
        %v1050 = vunpack.c.l.b16 %v943
        %v1051 = vunpack.c.l.b16 %v944
        %v1052 = vunpack.c.l.b16 %v945
        %v1053 = vunpack.c.l.b16 %v946
        %v1054 = vunpack.c.l.b16 %v947
        %v1055 = vunpack.c.l.b16 %v948
        %v1056 = vunpack.c.l.b16 %v949
        %v1057 = vunpack.c.l.b16 %v950
        %v1058 = vunpack.c.l.b16 %v951
        %v1059 = vunpack.c.l.b16 %v952
        %v1060 = vunpack.c.l.b16 %v953
        %v1061 = vunpack.c.l.b16 %v954
        %v1062 = vunpack.c.l.b16 %v955
        %v1063 = vunpack.c.l.b16 %v956
        %v1064 = vunpack.c.l.b16 %v957
        %v1065 = vunpack.c.l.b16 %v958
        %v1066 = vunpack.c.l.b16 %v959
        %v1067 = vunpack.c.l.b16 %v960
        %v1068 = vunpack.c.l.b16 %v961
        %v1069 = vunpack.c.l.b16 %v962
        %v1070 = vunpack.c.l.b16 %v963
        %v1071 = vunpack.c.l.b16 %v964
        %v1072 = vunpack.c.l.b16 %v965
        %v1073 = vunpack.c.l.b16 %v966
        %v1074 = vunpack.c.l.b16 %v967
        %v1075 = vunpack.c.l.b16 %v968
        %v1076 = vunpack.c.l.b16 %v969
        %v1077 = vunpack.c.l.b16 %v970
        %v1078 = vunpack.c.l.b16 %v971
        %v1079 = vunpack.c.l.b16 %v972
        %v1080 = vunpack.c.l.b16 %v973
        %v1081 = vunpack.c.l.b16 %v974
        %v1082 = vunpack.c.l.b16 %v975
        %v1083 = vunpack.c.l.b16 %v976
        %v1084 = vunpack.c.l.b16 %v977
        %v1085 = vunpack.c.l.b16 %v978
        %v1086 = vunpack.c.l.b16 %v979
        %v1087 = vunpack.c.l.b16 %v980
        %v1088 = vunpack.c.l.b16 %v981
        %v1089 = vunpack.c.l.b16 %v982
        %v1090 = vunpack.c.l.b16 %v983
        %v1091 = vunpack.c.l.b16 %v984
        %v1092 = vpack.c.b16 %v1045, %v1044
        %v1093 = vpack.c.b16 %v1047, %v1046
        %v1094 = vpack.c.b16 %v1049, %v1048
        %v1095 = vpack.c.b16 %v1051, %v1050
        %v1096 = vpack.c.b16 %v1053, %v1052
        %v1097 = vpack.c.b16 %v1055, %v1054
        %v1098 = vpack.c.b16 %v1057, %v1056
        %v1099 = vpack.c.b16 %v1059, %v1058
        %v1100 = vpack.c.b16 %v1061, %v1060
        %v1101 = vpack.c.b16 %v1063, %v1062
        %v1102 = vpack.c.b16 %v1065, %v1064
        %v1103 = vpack.c.b16 %v1067, %v1066
        %v1104 = vpack.c.b16 %v1069, %v1068
        %v1105 = vpack.c.b16 %v1071, %v1070
        %v1106 = vpack.c.b16 %v1073, %v1072
        %v1107 = vpack.c.b16 %v1075, %v1074
        %v1108 = vpack.c.b16 %v1077, %v1076
        %v1109 = vpack.c.b16 %v1079, %v1078
        %v1110 = vpack.c.b16 %v1081, %v1080
        %v1111 = vpack.c.b16 %v1083, %v1082
        %v1112 = vpack.c.b16 %v1085, %v1084
        %v1113 = vpack.c.b16 %v1087, %v1086
        %v1114 = vpack.c.b16 %v1089, %v1088
        %v1115 = vpack.c.b16 %v1091, %v1090
        %1140 = vmatpush.bf16.msra.mxu0 %v1099
        %1141 = vmatpush.bf16.msra.mxu0 %v1098
        %1142 = vmatpush.bf16.msra.mxu0 %v1097
        %1143 = vmatpush.bf16.msra.mxu0 %v1096
        %1144 = vmatpush.bf16.msra.mxu0 %v1095
        %1145 = vmatpush.bf16.msra.mxu0 %v1094
        %1146 = vmatpush.bf16.msra.mxu0 %v1093
        %1147 = vmatpush.bf16.msra.mxu0 %v1092
        %1148 = vmatmul.bf16.gmra.mxu0 %v990
        %v1149 = vpop.f32.mrf.mxu0
        %v1150 = vadd.f32 0.0, %v1149
        %v1151 = vpop.f32.mrf.mxu0
        %1152 = vdwg.mxu0
        %1153 = vmatpush.bf16.msra.mxu0 %v1107
        %1154 = vmatpush.bf16.msra.mxu0 %v1106
        %1155 = vmatpush.bf16.msra.mxu0 %v1105
        %1156 = vmatpush.bf16.msra.mxu0 %v1104
        %1157 = vmatpush.bf16.msra.mxu0 %v1103
        %1158 = vmatpush.bf16.msra.mxu0 %v1102
        %1159 = vmatpush.bf16.msra.mxu0 %v1101
        %1160 = vmatpush.bf16.msra.mxu0 %v1100
        %1161 = vmatmul.bf16.gmra.mxu0 %v991
        %v1162 = vpop.f32.mrf.mxu0
        %v1163 = vadd.f32 %v1150, %v1162
        %v1164 = vpop.f32.mrf.mxu0
        %1165 = vdwg.mxu0
        %1166 = vmatpush.bf16.msra.mxu0 %v1115
        %1167 = vmatpush.bf16.msra.mxu0 %v1114
        %1168 = vmatpush.bf16.msra.mxu0 %v1113
        %1169 = vmatpush.bf16.msra.mxu0 %v1112
        %1170 = vmatpush.bf16.msra.mxu0 %v1111
        %1171 = vmatpush.bf16.msra.mxu0 %v1110
        %1172 = vmatpush.bf16.msra.mxu0 %v1109
        %1173 = vmatpush.bf16.msra.mxu0 %v1108
        %1174 = vmatmul.bf16.gmra.mxu0 %v992
        %v1175 = vpop.f32.mrf.mxu0
        %v1176 = vadd.f32 %v1163, %v1175
        %v1177 = vpop.f32.mrf.mxu0
        %1178 = vdwg.mxu0
        %v1179 = vld [vmem:[%s452] sm:$0xf]
        %v1180 = vunpack.c.l.bf16 %v1179
        %v1181 = vpack.c.bf16 %v692, %v692
        %v1182 = vpack.c.bf16 %v934, %v934
        %v1183 = vpack.c.bf16 %v1176, %v1176
        %vm1184 = vcmask 130048
        %v1186 = vsel %vm1184, %v1181, 0
        %v1189 = vsel %vm1184, %v1182, 0
        %1191 = vmatpush.bf16.xpose.msra.mxu0 0
        %1192 = vmatpush.bf16.xpose.msra.mxu0 0
        %1193 = vmatpush.bf16.xpose.msra.mxu0 0
        %1194 = vmatpush.bf16.xpose.msra.mxu0 0
        %1195 = vmatpush.bf16.xpose.msra.mxu0 0
        %1196 = vmatpush.bf16.xpose.msra.mxu0 0
        %1197 = vmatpush.bf16.xpose.msra.mxu0 0
        %1198 = vmatpush.bf16.xpose.msra.mxu0 %v1189
        %1199 = vmatmul.bf16.gmra.mxu0 %v1186
        %v1200 = vpop.f32.mrf.mxu0
        %v1201 = vadd.f32 %v1180, %v1200
        %v1202 = vpop.f32.mrf.mxu0
        %1203 = vdwg.mxu0
        %vm1204 = vcmask 64512
        %v1205 = vsel %vm1204, %v1201, -inf
        %1206 = vmax.xlane.f32.xlu0 %v1205
        %v1207 = vpop.xlane.xlu0 %1206
        %v1208 = vsub.f32 %v1201, %v1207
        %v1209 = vmul.f32 %v1208, 1.442695
        %v1210 = vpow.pop %v1209
        %v1211 = vsel %vm1204, %v1210, 0.0
        %1212 = vadd.xlane.f32.xlu0 %v1211
        %v1213 = vpop.xlane.xlu0 %1212
        %v1214 = vrcp.pop %v1213
        %v1215 = vmul.f32 %v1210, %v1214
        %v1216 = vpack.c.bf16 %v1215, %v1215
        %vm1217 = vcmask 60416
        %1218 = vst.msk [vmem:[%s433] sm:$0xf] %vm1217, %v1216
        %v1220 = vsel %vm1204, %v1216, 0
        %vm1222 = vcmask 1043456
        %v1224 = vsel %vm1222, %v1183, 0
        %1226 = vmatpush.bf16.msra.mxu0 0
        %1227 = vmatpush.bf16.msra.mxu0 0
        %1228 = vmatpush.bf16.msra.mxu0 0
        %1229 = vmatpush.bf16.msra.mxu0 0
        %1230 = vmatpush.bf16.msra.mxu0 0
        %1231 = vmatpush.bf16.msra.mxu0 0
        %1232 = vmatpush.bf16.msra.mxu0 0
        %1233 = vmatpush.bf16.msra.mxu0 %v1224
        %1234 = vmatmul.bf16.gmra.mxu0 %v1220
        %v1235 = vpop.f32.mrf.mxu0
        %v1236 = vadd.f32 0.0, %v1235
        %v1237 = vpop.f32.mrf.mxu0
        %1238 = vdwg.mxu0
        %v1239 = vpack.c.bf16 %v1236, %v1236
        %vm1240 = vcmask 125952
        %1241 = vst.msk [vmem:[#allocation2] sm:$0xf] %vm1240, %v1239
        %v1243 = vunpack.c.l.b16 %v1181
        %v1244 = vpack.c.b16 %v1243, %v1243
        %1245 = vrot.lane.b32.xlu0 %v1244, 112
        %v1246 = vpop.permute.xlu0 %1245
        %v1248 = vunpack.c.l.b16 %v1182
        %v1249 = vpack.c.b16 %v1248, %v1248
        %1250 = vrot.lane.b32.xlu0 %v1249, 112
        %v1251 = vpop.permute.xlu0 %1250
        %v1253 = vsel %vm1184, %v1246, 0
        %v1256 = vsel %vm1184, %v1251, 0
        %1258 = vmatpush.bf16.xpose.msra.mxu0 0
        %1259 = vmatpush.bf16.xpose.msra.mxu0 0
        %1260 = vmatpush.bf16.xpose.msra.mxu0 0
        %1261 = vmatpush.bf16.xpose.msra.mxu0 0
        %1262 = vmatpush.bf16.xpose.msra.mxu0 0
        %1263 = vmatpush.bf16.xpose.msra.mxu0 0
        %1264 = vmatpush.bf16.xpose.msra.mxu0 0
        %1265 = vmatpush.bf16.xpose.msra.mxu0 %v1256
        %1266 = vmatmul.bf16.gmra.mxu0 %v1253
        %v1267 = vpop.f32.mrf.mxu0
        %v1268 = vadd.f32 %v1180, %v1267
        %v1269 = vpop.f32.mrf.mxu0
        %1270 = vdwg.mxu0
        %v1271 = vsel %vm1204, %v1268, -inf
        %1272 = vmax.xlane.f32.xlu0 %v1271
        %v1273 = vpop.xlane.xlu0 %1272
        %v1274 = vsub.f32 %v1268, %v1273
        %v1275 = vmul.f32 %v1274, 1.442695
        %v1276 = vpow.pop %v1275
        %v1277 = vsel %vm1204, %v1276, 0.0
        %1278 = vadd.xlane.f32.xlu0 %v1277
        %v1279 = vpop.xlane.xlu0 %1278
        %v1280 = vrcp.pop %v1279
        %v1281 = vmul.f32 %v1276, %v1280
        %v1282 = vpack.c.bf16 %v1281, %v1281
        %s1283 = scalar_lea.vmem %s433, 4 [#allocation5]
        %1284 = vst.msk [vmem:[%s1283] sm:$0xf] %vm1217, %v1282
        %v1286 = vunpack.c.l.b16 %v1183
        %v1287 = vpack.c.b16 %v1286, %v1286
        %1288 = vrot.lane.b32.xlu0 %v1287, 112
        %v1289 = vpop.permute.xlu0 %1288
        %v1291 = vsel %vm1204, %v1282, 0
        %v1294 = vsel %vm1222, %v1289, 0
        %1296 = vmatpush.bf16.msra.mxu0 0
        %1297 = vmatpush.bf16.msra.mxu0 0
        %1298 = vmatpush.bf16.msra.mxu0 0
        %1299 = vmatpush.bf16.msra.mxu0 0
        %1300 = vmatpush.bf16.msra.mxu0 0
        %1301 = vmatpush.bf16.msra.mxu0 0
        %1302 = vmatpush.bf16.msra.mxu0 0
        %1303 = vmatpush.bf16.msra.mxu0 %v1294
        %1304 = vmatmul.bf16.gmra.mxu0 %v1291
        %v1305 = vpop.f32.mrf.mxu0
        %v1306 = vadd.f32 0.0, %v1305
        %v1307 = vpop.f32.mrf.mxu0
        %1308 = vdwg.mxu0
        %v1309 = vpack.c.bf16 %v1306, %v1306
        %1311 = vrot.lane.b32.xlu0 %v1309, 16
        %v1312 = vpop.permute.xlu0 %1311
        %vm1314 = vcmask 257152
        %1315 = vst.msk [vmem:[#allocation2] sm:$0xf] %vm1314, %v1312
        %v1316 = vld [vmem:[#allocation2] sm:$0xf]
        %v1317 = vld [vmem:[%s7] sm:$0xff]
        %v1318 = vld [vmem:[%s7 + $0x8] sm:$0xf]
        %v1319 = vld [vmem:[%s7 + $0xc] sm:$0xff]
        %v1320 = vld [vmem:[%s7 + $0x14] sm:$0xf]
        %v1321 = vld [vmem:[%s7 + $0x18] sm:$0xff]
        %v1322 = vld [vmem:[%s7 + $0x20] sm:$0xf]
        %v1323 = vld [vmem:[%s7 + $0x24] sm:$0xff]
        %v1324 = vld [vmem:[%s7 + $0x2c] sm:$0xf]
        %v1333 = vunpack.c.l.b16 %v1317
        %v1334 = vunpack.c.h.b16 %v1317
        %v1335 = vunpack.c.l.b16 %v1318
        %v1336 = vunpack.c.l.b16 %v1319
        %v1337 = vunpack.c.h.b16 %v1319
        %v1338 = vunpack.c.l.b16 %v1320
        %v1339 = vunpack.c.l.b16 %v1321
        %v1340 = vunpack.c.h.b16 %v1321
        %v1341 = vunpack.c.l.b16 %v1322
        %v1342 = vunpack.c.l.b16 %v1323
        %v1343 = vunpack.c.h.b16 %v1323
        %v1344 = vunpack.c.l.b16 %v1324
        %v1345 = vpack.c.b16 %v1336, %v1333
        %v1346 = vpack.c.b16 %v1337, %v1334
        %v1347 = vpack.c.b16 %v1338, %v1335
        %v1348 = vpack.c.b16 %v1342, %v1339
        %v1349 = vpack.c.b16 %v1343, %v1340
        %v1350 = vpack.c.b16 %v1344, %v1341
        %vm1357 = vcmask 261120
        %v1359 = vsel %vm1357, %v1316, 0
        %1361 = vmatpush.bf16.msra.mxu0 0
        %1362 = vmatpush.bf16.msra.mxu0 0
        %1363 = vmatpush.bf16.msra.mxu0 0
        %1364 = vmatpush.bf16.msra.mxu0 0
        %1365 = vmatpush.bf16.msra.mxu0 0
        %1366 = vmatpush.bf16.msra.mxu0 0
        %1367 = vmatpush.bf16.msra.mxu0 %v1348
        %1368 = vmatpush.bf16.msra.mxu0 %v1345
        %1369 = vmatmul.bf16.gmra.mxu0 %v1359
        %v1370 = vpop.f32.mrf.mxu0
        %v1371 = vadd.f32 %v454, %v1370
        %v1372 = vpop.f32.mrf.mxu0
        %1373 = vdwg.mxu0
        %1374 = vmatpush.bf16.msra.mxu0 0
        %1375 = vmatpush.bf16.msra.mxu0 0
        %1376 = vmatpush.bf16.msra.mxu0 0
        %1377 = vmatpush.bf16.msra.mxu0 0
        %1378 = vmatpush.bf16.msra.mxu0 0
        %1379 = vmatpush.bf16.msra.mxu0 0
        %1380 = vmatpush.bf16.msra.mxu0 %v1349
        %1381 = vmatpush.bf16.msra.mxu0 %v1346
        %1382 = vmatmul.bf16.gmra.mxu0 %v1359
        %v1383 = vpop.f32.mrf.mxu0
        %v1384 = vadd.f32 %v455, %v1383
        %v1385 = vpop.f32.mrf.mxu0
        %1386 = vdwg.mxu0
        %1387 = vmatpush.bf16.msra.mxu0 0
        %1388 = vmatpush.bf16.msra.mxu0 0
        %1389 = vmatpush.bf16.msra.mxu0 0
        %1390 = vmatpush.bf16.msra.mxu0 0
        %1391 = vmatpush.bf16.msra.mxu0 0
        %1392 = vmatpush.bf16.msra.mxu0 0
        %1393 = vmatpush.bf16.msra.mxu0 %v1350
        %1394 = vmatpush.bf16.msra.mxu0 %v1347
        %1395 = vmatmul.bf16.gmra.mxu0 %v1359
        %v1396 = vpop.f32.mrf.mxu0
        %v1397 = vadd.f32 %v456, %v1396
        %v1398 = vpop.f32.mrf.mxu0
        %1399 = vdwg.mxu0
        %v1400 = vadd.f32 %v1371, %v1384
        %v1401 = vadd.f32 %v1400, %v1397
        %1402 = vadd.xlane.f32.xlu0 %v1401
        %v1403 = vpop.xlane.xlu0 %1402
        %v1404 = vmul.f32 %v1403, 0.0033333334
        %v1405 = vmul.f32 %v1371, %v1371
        %v1406 = vmul.f32 %v1384, %v1384
        %v1407 = vmul.f32 %v1397, %v1397
        %v1408 = vadd.f32 %v1405, %v1406
        %v1409 = vadd.f32 %v1408, %v1407
        %1410 = vadd.xlane.f32.xlu0 %v1409
        %v1411 = vpop.xlane.xlu0 %1410
        %v1412 = vmul.f32 %v1411, 0.0033333334
        %v1413 = vmul.f32 %v1404, %v1404
        %v1414 = vsub.f32 %v1412, %v1413
        %v1415 = vsub.f32 %v1371, %v1404
        %v1416 = vsub.f32 %v1384, %v1404
        %v1417 = vsub.f32 %v1397, %v1404
        %v1418 = vadd.f32 %v1414, 1e-06
        %v1419 = vrsqrt.pop %v1418
        %v1420 = vmul.f32 %v1419, %v1418
        %v1421 = vmul.f32 %v1420, %v1419
        %v1422 = vmul.f32 0.5, %v1421
        %v1423 = vsub.f32 1.5, %v1422
        %v1424 = vmul.f32 %v1419, %v1423
        %vm1425 = vweird.f32 %v1418
        %vm1426 = vweird.f32 %v1419
        %vm1427 = vmor %vm1425, %vm1426
        %v1428 = vsel %vm1427, %v1419, %v1424
        %v1429 = vmul.f32 %v1415, %v1428
        %v1430 = vmul.f32 %v1416, %v1428
        %v1431 = vmul.f32 %v1417, %v1428
        %v1432 = vld [vmem:[%s8] sm:$0x7]
        %v1434 = vperm.slane %v1432, 0
        %v1435 = vperm.slane %v1432, 1
        %v1436 = vperm.slane %v1432, 2
        %v1440 = vmul.f32 %v1429, %v1434
        %v1441 = vmul.f32 %v1430, %v1435
        %v1442 = vmul.f32 %v1431, %v1436
        %v1443 = vld [vmem:[%s9] sm:$0x7]
        %v1445 = vperm.slane %v1443, 0
        %v1446 = vperm.slane %v1443, 1
        %v1447 = vperm.slane %v1443, 2
        %v1451 = vadd.f32 %v1440, %v1445
        %v1452 = vadd.f32 %v1441, %v1446
        %v1453 = vadd.f32 %v1442, %v1447
        %1454 = vst [vmem:[%s426] sm:$0xff] %v1451
        %1455 = vst [vmem:[%s426 + $0x8] sm:$0xff] %v1452
        %1456 = vst [vmem:[%s426 + $0x10] sm:$0xff] %v1453
        %s1457 = sand.u32 %s267, 1
        %s1458 = scalar_lea.sflag [#allocation4], %s1457
        %s1459 = sand.u32 %s267, 1
        %s1460 = smul.addr %s1459, 24
        %s1461 = scalar_lea.vmem [#allocation3], %s1460
        %s1462 = sand.u32 %s293, 1
        %s1463 = scalar_lea.sflag [#allocation6], %s1462
        %s1464 = sand.u32 %s293, 1
        %s1465 = smul.addr %s1464, 8
        %s1466 = scalar_lea.vmem [#allocation5], %s1465
        // Predicated region
        $region61: #{tpu_custom_call.1} parent=59 // pred_check
          %p1467 = pneg %p277
        $region62: #{tpu_custom_call.1} parent=59 // pred_check_branch
          %1469 = sbr.rel (%p1467) target = $region64
        $region63: #{tpu_custom_call.1} parent=59 // pred_region
          %1471 = vsyncadd %s1458, 0
          %s1472 = smul.addr %s29, 3
          %s1473 = smul.addr %s1472, 8
          %s1474 = scalar_lea.hbm %s10, %s1473
          %s1476 = sshll.u32 %s1461, 4
          %s1477 = int_to_ptr.vmem [resolvable:$true] %s1476
          %s1478 = sshll.u32 %s1474, 4
          %s1479 = int_to_ptr.hbm [resolvable:$true] %s1478
          %1481 = dma.vmem_to_hbm [thread:$0]  %s1477, 384, %s1479, %s1458
        $region64: #{tpu_custom_call.1} parent=59 // pred_fallthru
          _
        // Predicated region
        $region65: #{tpu_custom_call.1} parent=59 // pred_check
          %p1482 = pneg %p303
        $region66: #{tpu_custom_call.1} parent=59 // pred_check_branch
          %1484 = sbr.rel (%p1482) target = $region68
        $region67: #{tpu_custom_call.1} parent=59 // pred_region
          %1486 = vsyncadd %s1463, 0
          %s1487 = smul.addr %s29, 2
          %s1488 = smul.addr %s1487, 4
          %s1489 = scalar_lea.hbm %s11, %s1488
          %s1490 = sshll.u32 %s1466, 4
          %s1491 = int_to_ptr.vmem [resolvable:$true] %s1490
          %s1492 = sshll.u32 %s1489, 4
          %s1493 = int_to_ptr.hbm [resolvable:$true] %s1492
          %1498 = dma.vmem_to_hbm [thread:$0]  %s1491, 128, %s1493, %s1463, 64, 64, 4
        $region68: #{tpu_custom_call.1} parent=59 // pred_fallthru
          _
      $region60: #{tpu_custom_call.1} parent=5 // pred_fallthru
        _
      %p1499 = scmp.le.s32.totalorder 2, %s24
      // Predicated region
      $region69: #{tpu_custom_call.1} parent=5 // pred_check
        %p1500 = pneg %p1499
      $region70: #{tpu_custom_call.1} parent=5 // pred_check_branch
        %1502 = sbr.rel (%p1500) target = $region72
      $region71: #{tpu_custom_call.1} parent=5 // pred_region
        %s1503 = ssub.s32 %s24, 2
        // Predicated region
        $region73: #{tpu_custom_call.1} parent=71 // pred_check
          %p1504 = pneg %p283
        $region74: #{tpu_custom_call.1} parent=71 // pred_check_branch
          %1506 = sbr.rel (%p1504) target = $region76
        $region75: #{tpu_custom_call.1} parent=71 // pred_region
          %s1507 = sand.u32 %s268, 1
          %s1508 = scalar_lea.sflag [#allocation4], %s1507
          %s1509 = sand.u32 %s268, 1
          %s1510 = smul.addr %s1509, 24
          %s1511 = scalar_lea.vmem [#allocation3], %s1510
          %1513 = dma.done %s1508, 384
        $region76: #{tpu_custom_call.1} parent=71 // pred_fallthru
          _
        // Predicated region
        $region77: #{tpu_custom_call.1} parent=71 // pred_check
          %p1514 = pneg %p309
        $region78: #{tpu_custom_call.1} parent=71 // pred_check_branch
          %1516 = sbr.rel (%p1514) target = $region80
        $region79: #{tpu_custom_call.1} parent=71 // pred_region
          %s1517 = sand.u32 %s294, 1
          %s1518 = scalar_lea.sflag [#allocation6], %s1517
          %s1519 = sand.u32 %s294, 1
          %s1520 = smul.addr %s1519, 8
          %s1521 = scalar_lea.vmem [#allocation5], %s1520
          %1523 = dma.done %s1518, 128
        $region80: #{tpu_custom_call.1} parent=71 // pred_fallthru
          _
      $region72: #{tpu_custom_call.1} parent=5 // pred_fallthru
        _
    $region6: #{tpu_custom_call.1} parent=1 // loop_footer
      %s28 = sadd.s32 1, %s24
    $region7: #{tpu_custom_call.1} parent=1 // loop_footer_branch
      %23 = sbr.rel target = $region3
    $region8: #{tpu_custom_call.1} parent=1 // loop_exit
      _
    %1524 = vsyncpa [#allocation4], 1
    %s1525 = scalar_lea.sflag [#allocation4], 1
    %1526 = vsyncpa %s1525, 1
    %1527 = vsyncpa [#allocation6], 1
    %s1528 = scalar_lea.sflag [#allocation6], 1
    %1529 = vsyncpa %s1528, 1

</llo_original>
